<compile_context>
chip_gen: v7x
topology: tpu7x:2x2x1
jax: 0.10.0
libtpu: 0.0.40
codegen_flags: <defaults>
</compile_context>

<pallas_src>
import functools

import jax
import jax.numpy as jnp
from jax.experimental import pallas as pl
from jax.experimental.pallas import tpu as pltpu


def _residual_ff_kernel(x_ref, w1_ref, b1_ref, w2_ref, b2_ref, o_ref, *, bf16_act):
    """o = FF(x) + x for one (tm, D) token tile.

    x_ref : (tm, D) input dtype                 - token tile
    w1_ref: (D, H)  bf16  (VMEM resident)       b1_ref: (1, H) f32
    w2_ref: (H, D)  bf16  (VMEM resident)       b2_ref: (1, D) f32
    o_ref : (tm, D) input dtype
    """
    x = x_ref[...]                                        # (tm, D)
    # --- fn(x): Linear -> GELU -> Linear, MXU in bf16 with f32 accumulation
    h = jnp.dot(x.astype(jnp.bfloat16), w1_ref[...],
                preferred_element_type=jnp.float32)       # (tm, H) f32
    h = h + b1_ref[...]                                   # bias broadcast (VPU)
    # TODO(synk): PyTorch nn.GELU default is exact erf; tanh approximation is
    # used here (~1e-3 systematic difference).
    if bf16_act:
        # v6e/v7x: bf16 EUP tanh ~doubles transcendental rate, saves a cast.
        h = jax.nn.gelu(h.astype(jnp.bfloat16), approximate=True)
    else:
        # v5e-safe: no bf16 VPU/EUP -> keep elementwise math in f32.
        h = jax.nn.gelu(h, approximate=True).astype(jnp.bfloat16)
    y = jnp.dot(h, w2_ref[...],
                preferred_element_type=jnp.float32)       # (tm, D) f32
    y = y + b2_ref[...]
    # --- residual add (the op this module itself owns)
    o_ref[...] = (y + x.astype(jnp.float32)).astype(o_ref.dtype)


@functools.partial(jax.jit, static_argnames=("tm", "bf16_act"))
def residual_feedforward(x, w1, b1, w2, b2, *, tm=256, bf16_act=False):
    """Residual(FeedForward)(x) = FF(x) + x, fused in a single Pallas kernel.

    x : (B, N, D),  w1: (D, H), b1: (H,), w2: (H, D), b2: (D,)
    """
    B, N, D = x.shape
    H = w1.shape[-1]

    # Flatten tokens (free view).  No padding: the grid uses cdiv and Pallas
    # masks the ragged last block (padded reads, dropped writes).
    T = B * N
    x2 = x.reshape(T, D)

    # bf16 weights (halves VMEM / HBM traffic, full-rate MXU); f32 biases.
    w1b = w1.astype(jnp.bfloat16)
    w2b = w2.astype(jnp.bfloat16)
    b1f = b1.astype(jnp.float32).reshape(1, H)
    b2f = b2.astype(jnp.float32).reshape(1, D)

    grid = (pl.cdiv(T, tm),)

    # Per-step VMEM footprint: double-buffered x / out tiles, single-buffered
    # bf16 weights + f32 biases, (tm, H) GELU intermediates.  Generous
    # headroom for compiler scratch, clamped under v7x's 64 MiB physical VMEM.
    isz = jnp.dtype(x.dtype).itemsize
    footprint = (2 * tm * D * isz          # x tile  x 2 buffers
                 + 2 * tm * D * isz        # out tile x 2 buffers
                 + 2 * D * H * 2           # bf16 W1 + W2 (single buffered)
                 + (H + D) * 4             # f32 biases
                 + tm * H * (4 + 2))       # f32 hidden + bf16 cast
    vmem_limit = min(max(2 * footprint + (4 << 20), 16 << 20), 56 << 20)

    cost = pl.CostEstimate(
        flops=2 * T * D * H * 2,                # two matmuls
        transcendentals=T * H,                  # tanh in the GELU
        bytes_accessed=(T * D * isz             # x in
                        + T * D * isz           # out
                        + 2 * D * H * 2         # bf16 weights
                        + (H + D) * 4),         # biases
    )

    kernel = functools.partial(_residual_ff_kernel, bf16_act=bf16_act)

    out = pl.pallas_call(
        kernel,
        out_shape=jax.ShapeDtypeStruct((T, D), x.dtype),
        grid_spec=pltpu.PrefetchScalarGridSpec(
            num_scalar_prefetch=0,
            grid=grid,
            in_specs=[
                # token tile: double-buffered (default) for DMA/compute overlap
                pl.BlockSpec((tm, D), lambda i: (i, 0)),
                # grid-invariant weights / biases: single buffer (Buffered(1))
                pl.BlockSpec((D, H), lambda i: (0, 0),
                             pipeline_mode=pl.Buffered(1)),
                pl.BlockSpec((1, H), lambda i: (0, 0),
                             pipeline_mode=pl.Buffered(1)),
                pl.BlockSpec((H, D), lambda i: (0, 0),
                             pipeline_mode=pl.Buffered(1)),
                pl.BlockSpec((1, D), lambda i: (0, 0),
                             pipeline_mode=pl.Buffered(1)),
            ],
            out_specs=pl.BlockSpec((tm, D), lambda i: (i, 0)),
        ),
        compiler_params=pltpu.CompilerParams(
            dimension_semantics=("parallel",),   # independent token tiles
            vmem_limit_bytes=vmem_limit,
        ),
        cost_estimate=cost,
    )(x2, w1b, b1f, w2b, b2f)

    return out.reshape(B, N, D)


def _reference(x, w1, b1, w2, b2):
    """Pure-JAX reference matching the kernel's precision (bf16 MXU inputs,
    f32 accumulation, f32 elementwise, residual added at full precision)."""
    xb = x.astype(jnp.bfloat16).astype(jnp.float32)
    w1b = w1.astype(jnp.bfloat16).astype(jnp.float32)
    w2b = w2.astype(jnp.bfloat16).astype(jnp.float32)
    h = jax.nn.gelu(jnp.dot(xb, w1b) + b1.reshape(1, -1), approximate=True)
    hb = h.astype(jnp.bfloat16).astype(jnp.float32)
    y = jnp.dot(hb, w2b) + b2.reshape(1, -1)
    return (y + x).astype(x.dtype)


if __name__ == "__main__":
    # Small but lane-aligned ViT-ish shapes: batch=2, tokens=200, embed=128,
    # MLP hidden=256.  T = 400 tokens with tm=256 -> grid of 2 steps, the
    # second of which is ragged (144 valid rows) and exercises the masked
    # read/dropped-write path that replaced explicit padding.
    B, N, D, H = 2, 200, 128, 256

    key = jax.random.PRNGKey(0)
    kx, k1, k2, k3, k4 = jax.random.split(key, 5)

    x = jax.random.normal(kx, (B, N, D), dtype=jnp.float32)
    w1 = jax.random.normal(k1, (D, H), dtype=jnp.float32) * (1.0 / jnp.sqrt(D))
    b1 = jax.random.normal(k2, (H,), dtype=jnp.float32) * 0.01
    w2 = jax.random.normal(k3, (H, D), dtype=jnp.float32) * (1.0 / jnp.sqrt(H))
    b2 = jax.random.normal(k4, (D,), dtype=jnp.float32) * 0.01

    out = residual_feedforward(x, w1, b1, w2, b2, tm=256)
    out = jax.block_until_ready(out)

    ref = _reference(x, w1, b1, w2, b2)
    assert out.shape == (B, N, D) and out.dtype == x.dtype
    max_err = float(jnp.max(jnp.abs(out - ref)))
    assert max_err < 2e-3, f"mismatch vs reference, max abs err {max_err}"

    print("KERNEL_OK")
</pallas_src>

<mosaic_0001>
module attributes {stable_mosaic.version = 11 : i64} {
  func.func @_residual_ff_kernel(%arg0: i32, %arg1: memref<256x128xf32, #tpu.memory_space<vmem>>, %arg2: memref<128x256xbf16, #tpu.memory_space<vmem>>, %arg3: memref<1x256xf32, #tpu.memory_space<vmem>>, %arg4: memref<256x128xbf16, #tpu.memory_space<vmem>>, %arg5: memref<1x128xf32, #tpu.memory_space<vmem>>, %arg6: memref<256x128xf32, #tpu.memory_space<vmem>>) attributes {dimension_semantics = [#tpu.dimension_semantics<parallel>], iteration_bounds = array<i64: 2>, scalar_prefetch = 0 : i64, scratch_operands = 0 : i64, tpu.core_type = #tpu.core_type<tc>, window_params = [{transform_indices = @transform_0, window_bounds = array<i64: 256, 128>}, {pipeline_mode = #tpu.pipeline_mode<synchronous>, transform_indices = @transform_1, window_bounds = array<i64: 128, 256>}, {pipeline_mode = #tpu.pipeline_mode<synchronous>, transform_indices = @transform_2, window_bounds = array<i64: 1, 256>}, {pipeline_mode = #tpu.pipeline_mode<synchronous>, transform_indices = @transform_3, window_bounds = array<i64: 256, 128>}, {pipeline_mode = #tpu.pipeline_mode<synchronous>, transform_indices = @transform_4, window_bounds = array<i64: 1, 128>}, {transform_indices = @transform_5, window_bounds = array<i64: 256, 128>}]} {
    %c0 = arith.constant 0 : index
    %c0_0 = arith.constant 0 : index
    %0 = vector.load %arg1[%c0, %c0_0] : memref<256x128xf32, #tpu.memory_space<vmem>>, vector<256x128xf32>
    %1 = arith.truncf %0 : vector<256x128xf32> to vector<256x128xbf16>
    %c0_1 = arith.constant 0 : index
    %c0_2 = arith.constant 0 : index
    %2 = vector.load %arg2[%c0_1, %c0_2] : memref<128x256xbf16, #tpu.memory_space<vmem>>, vector<128x256xbf16>
    %cst = arith.constant dense<0.000000e+00> : vector<256x256xf32>
    %3 = tpu.matmul %1, %2, %cst {dimension_numbers = #tpu.dot_dimension_numbers<[1], [0], [0], [1], [0, 0, 1, 1], [], []>} : vector<256x128xbf16>, vector<128x256xbf16>, vector<256x256xf32> -> vector<256x256xf32>
    %c0_3 = arith.constant 0 : index
    %c0_4 = arith.constant 0 : index
    %4 = vector.load %arg3[%c0_3, %c0_4] : memref<1x256xf32, #tpu.memory_space<vmem>>, vector<1x256xf32>
    %5 = vector.broadcast %4 : vector<1x256xf32> to vector<256x256xf32>
    %6 = arith.addf %3, %5 : vector<256x256xf32>
    %7 = arith.mulf %6, %6 : vector<256x256xf32>
    %8 = arith.mulf %6, %7 : vector<256x256xf32>
    %cst_5 = arith.constant 4.471500e-02 : f32
    %9 = vector.broadcast %cst_5 : f32 to vector<256x256xf32>
    %10 = arith.mulf %9, %8 : vector<256x256xf32>
    %11 = arith.addf %6, %10 : vector<256x256xf32>
    %cst_6 = arith.constant 0.797884583 : f32
    %12 = vector.broadcast %cst_6 : f32 to vector<256x256xf32>
    %13 = arith.mulf %12, %11 : vector<256x256xf32>
    %14 = math.tanh %13 : vector<256x256xf32>
    %cst_7 = arith.constant 1.000000e+00 : f32
    %15 = vector.broadcast %cst_7 : f32 to vector<256x256xf32>
    %16 = arith.addf %15, %14 : vector<256x256xf32>
    %cst_8 = arith.constant 5.000000e-01 : f32
    %17 = vector.broadcast %cst_8 : f32 to vector<256x256xf32>
    %18 = arith.mulf %17, %16 : vector<256x256xf32>
    %19 = arith.mulf %6, %18 : vector<256x256xf32>
    %20 = arith.truncf %19 : vector<256x256xf32> to vector<256x256xbf16>
    %c0_9 = arith.constant 0 : index
    %c0_10 = arith.constant 0 : index
    %21 = vector.load %arg4[%c0_9, %c0_10] : memref<256x128xbf16, #tpu.memory_space<vmem>>, vector<256x128xbf16>
    %cst_11 = arith.constant dense<0.000000e+00> : vector<256x128xf32>
    %22 = tpu.matmul %20, %21, %cst_11 {dimension_numbers = #tpu.dot_dimension_numbers<[1], [0], [0], [1], [0, 0, 1, 1], [], []>} : vector<256x256xbf16>, vector<256x128xbf16>, vector<256x128xf32> -> vector<256x128xf32>
    %c0_12 = arith.constant 0 : index
    %c0_13 = arith.constant 0 : index
    %23 = vector.load %arg5[%c0_12, %c0_13] : memref<1x128xf32, #tpu.memory_space<vmem>>, vector<1x128xf32>
    %24 = vector.broadcast %23 : vector<1x128xf32> to vector<256x128xf32>
    %25 = arith.addf %22, %24 : vector<256x128xf32>
    %26 = arith.addf %25, %0 : vector<256x128xf32>
    %c0_14 = arith.constant 0 : index
    %c0_15 = arith.constant 0 : index
    %27 = vector.load %arg6[%c0_14, %c0_15] : memref<256x128xf32, #tpu.memory_space<vmem>>, vector<256x128xf32>
    tpu.vector_store %arg6[%c0_14, %c0_15], %26 {strides = array<i32>} : memref<256x128xf32, #tpu.memory_space<vmem>>, vector<256x128xf32>,
    return
  }
  func.func @transform_0(%arg0: i32) -> (i32, i32) {
    %c0_i32 = arith.constant 0 : i32
    %c0_i32_0 = arith.constant 0 : i32
    return %arg0, %c0_i32 : i32, i32
  }
  func.func @transform_1(%arg0: i32) -> (i32, i32) {
    %c0_i32 = arith.constant 0 : i32
    %c0_i32_0 = arith.constant 0 : i32
    %c0_i32_1 = arith.constant 0 : i32
    return %c0_i32, %c0_i32_0 : i32, i32
  }
  func.func @transform_2(%arg0: i32) -> (i32, i32) {
    %c0_i32 = arith.constant 0 : i32
    %c0_i32_0 = arith.constant 0 : i32
    %c0_i32_1 = arith.constant 0 : i32
    return %c0_i32, %c0_i32_0 : i32, i32
  }
  func.func @transform_3(%arg0: i32) -> (i32, i32) {
    %c0_i32 = arith.constant 0 : i32
    %c0_i32_0 = arith.constant 0 : i32
    %c0_i32_1 = arith.constant 0 : i32
    return %c0_i32, %c0_i32_0 : i32, i32
  }
  func.func @transform_4(%arg0: i32) -> (i32, i32) {
    %c0_i32 = arith.constant 0 : i32
    %c0_i32_0 = arith.constant 0 : i32
    %c0_i32_1 = arith.constant 0 : i32
    return %c0_i32, %c0_i32_0 : i32, i32
  }
  func.func @transform_5(%arg0: i32) -> (i32, i32) {
    %c0_i32 = arith.constant 0 : i32
    %c0_i32_0 = arith.constant 0 : i32
    return %arg0, %c0_i32 : i32, i32
  }
}

</mosaic_0001>

<llo_original>
// kernel: residual_feedforward.1
$region0: #{residual_feedforward.1}
  #allocation0 [shape = 'u32[]', space=smem, size = 0x4, offset = 0x4, fixed_abs, tag = 'smem constant byte address 0x4 - core index']
  #allocation1 [shape = 'u32[144,128]{1,0:T(1,128)}', space=vmem, size = 0x12000, scoped, tag = 'internal scratch']
  %s0 = inlined_call_operand.vmem [shape: f32[400,128], index: 0, kind: input, shape index: {}]
  %s1 = inlined_call_operand.vmem [shape: bf16[128,256], index: 1, kind: input, shape index: {}]
  %s2 = inlined_call_operand.vmem [shape: f32[1,256], index: 2, kind: input, shape index: {}]
  %s3 = inlined_call_operand.vmem [shape: bf16[256,128], index: 3, kind: input, shape index: {}]
  %s4 = inlined_call_operand.vmem [shape: f32[1,128], index: 4, kind: input, shape index: {}]
  %s5 = inlined_call_operand.hbm [shape: f32[400,128], index: 5, kind: output, shape index: {}]
  %s6 = sld [smem:[#allocation0]]
  $region53: #{residual_feedforward.1} parent=0
    _
  %s8 = ssub.s32 1, %s6
  %s9 = scalar_select 0, %s8, %s6
  $region1: #{residual_feedforward.1} parent=0
    #allocation2 [shape = 'u8[262144]{0}', space=vmem, size = 0x40000, scoped, tag = 'output window, operand 0']
    #allocation3 [shape = 's32[2]{0}', space=sflag, size = 0x8, scoped, tag = 'scoped memory for residual_feedforward.1']
    %10 = vsyncpa [#allocation3], 0
    %s11 = scalar_lea.sflag [#allocation3], 1
    %12 = vsyncpa %s11, 0
    loop: start=0, step=1, limit=4
    $region2: #{residual_feedforward.1} parent=1 // loop_pre_header
      _
    $region3: #{residual_feedforward.1} parent=1 // loop_header
      %s14 = sphi 0, %s18
      %p15 = scmp.ge.s32.totalorder %s14, 4
      %s24 = sphi 0, %s26
      %s27 = sphi 0, %s24
      %s28 = sphi 0, %s27
      %s44 = sphi 0, %s28
      %s48 = sphi 0, %s48
      %s50 = sphi 0, %s48
      %s51 = sphi 0, %s50
      %s65 = sphi 0, %s51
      %s69 = sphi 0, %s69
      %s71 = sphi 0, %s69
      %s72 = sphi 0, %s71
      %s86 = sphi 0, %s72
      %s90 = sphi 0, %s90
      %s92 = sphi 0, %s90
      %s93 = sphi 0, %s92
      %s107 = sphi 0, %s93
      %s111 = sphi 0, %s111
      %s113 = sphi 0, %s111
      %s114 = sphi 0, %s113
      %s128 = sphi 0, %s114
      %s134 = sphi 0, %s136
      %s137 = sphi 0, %s134
      %s138 = sphi 0, %s137
      %s154 = sphi 0, %s138
    $region4: #{residual_feedforward.1} parent=1 // loop_header_branch
      %17 = sbr.rel (%p15) target = $region8
    $region5: #{residual_feedforward.1} parent=1 // loop_body
      %s19 = ssub.s32 %s14, 1
      %s20 = ssub.s32 %s14, 2
      %s21 = sadd.s32 %s14, 1
      %s22 = ssub.s32 %s14, %s21
      %p23 = scmp.eq.s32.totalorder %s22, 0
      %s25 = sadd.s32 %s24, 1
      %s26 = scalar_select %p23, %s24, %s25
      %p29 = pneg %p23
      %p30 = scmp.eq.s32.totalorder %s14, 1
      %p31 = por %p29, %p30
      %p32 = scmp.ne.s32.totalorder %s24, %s27
      %p33 = scmp.eq.s32.totalorder %s14, 0
      %p34 = por %p32, %p33
      %p35 = scmp.ne.s32.totalorder %s24, %s27
      %p36 = scmp.eq.s32.totalorder %s19, 1
      %p37 = por %p35, %p36
      %p38 = scmp.ne.s32.totalorder %s27, %s28
      %p39 = scmp.eq.s32.totalorder %s19, 0
      %p40 = por %p38, %p39
      %p41 = scmp.ne.s32.totalorder %s27, %s28
      %p42 = scmp.eq.s32.totalorder %s20, 1
      %p43 = por %p41, %p42
      %p45 = scmp.ne.s32.totalorder %s28, %s44
      %p46 = scmp.eq.s32.totalorder %s20, 0
      %p47 = por %p45, %p46
      %s49 = sadd.s32 %s48, 1
      %p52 = scmp.eq.s32.totalorder %s14, 1
      %p53 = scmp.ne.s32.totalorder %s48, %s50
      %p54 = scmp.eq.s32.totalorder %s14, 0
      %p55 = por %p53, %p54
      %p56 = scmp.ne.s32.totalorder %s48, %s50
      %p57 = scmp.eq.s32.totalorder %s19, 1
      %p58 = por %p56, %p57
      %p59 = scmp.ne.s32.totalorder %s50, %s51
      %p60 = scmp.eq.s32.totalorder %s19, 0
      %p61 = por %p59, %p60
      %p62 = scmp.ne.s32.totalorder %s50, %s51
      %p63 = scmp.eq.s32.totalorder %s20, 1
      %p64 = por %p62, %p63
      %p66 = scmp.ne.s32.totalorder %s51, %s65
      %p67 = scmp.eq.s32.totalorder %s20, 0
      %p68 = por %p66, %p67
      %s70 = sadd.s32 %s69, 1
      %p73 = scmp.eq.s32.totalorder %s14, 1
      %p74 = scmp.ne.s32.totalorder %s69, %s71
      %p75 = scmp.eq.s32.totalorder %s14, 0
      %p76 = por %p74, %p75
      %p77 = scmp.ne.s32.totalorder %s69, %s71
      %p78 = scmp.eq.s32.totalorder %s19, 1
      %p79 = por %p77, %p78
      %p80 = scmp.ne.s32.totalorder %s71, %s72
      %p81 = scmp.eq.s32.totalorder %s19, 0
      %p82 = por %p80, %p81
      %p83 = scmp.ne.s32.totalorder %s71, %s72
      %p84 = scmp.eq.s32.totalorder %s20, 1
      %p85 = por %p83, %p84
      %p87 = scmp.ne.s32.totalorder %s72, %s86
      %p88 = scmp.eq.s32.totalorder %s20, 0
      %p89 = por %p87, %p88
      %s91 = sadd.s32 %s90, 1
      %p94 = scmp.eq.s32.totalorder %s14, 1
      %p95 = scmp.ne.s32.totalorder %s90, %s92
      %p96 = scmp.eq.s32.totalorder %s14, 0
      %p97 = por %p95, %p96
      %p98 = scmp.ne.s32.totalorder %s90, %s92
      %p99 = scmp.eq.s32.totalorder %s19, 1
      %p100 = por %p98, %p99
      %p101 = scmp.ne.s32.totalorder %s92, %s93
      %p102 = scmp.eq.s32.totalorder %s19, 0
      %p103 = por %p101, %p102
      %p104 = scmp.ne.s32.totalorder %s92, %s93
      %p105 = scmp.eq.s32.totalorder %s20, 1
      %p106 = por %p104, %p105
      %p108 = scmp.ne.s32.totalorder %s93, %s107
      %p109 = scmp.eq.s32.totalorder %s20, 0
      %p110 = por %p108, %p109
      %s112 = sadd.s32 %s111, 1
      %p115 = scmp.eq.s32.totalorder %s14, 1
      %p116 = scmp.ne.s32.totalorder %s111, %s113
      %p117 = scmp.eq.s32.totalorder %s14, 0
      %p118 = por %p116, %p117
      %p119 = scmp.ne.s32.totalorder %s111, %s113
      %p120 = scmp.eq.s32.totalorder %s19, 1
      %p121 = por %p119, %p120
      %p122 = scmp.ne.s32.totalorder %s113, %s114
      %p123 = scmp.eq.s32.totalorder %s19, 0
      %p124 = por %p122, %p123
      %p125 = scmp.ne.s32.totalorder %s113, %s114
      %p126 = scmp.eq.s32.totalorder %s20, 1
      %p127 = por %p125, %p126
      %p129 = scmp.ne.s32.totalorder %s114, %s128
      %p130 = scmp.eq.s32.totalorder %s20, 0
      %p131 = por %p129, %p130
      %s132 = ssub.s32 %s14, %s21
      %p133 = scmp.eq.s32.totalorder %s132, 0
      %s135 = sadd.s32 %s134, 1
      %s136 = scalar_select %p133, %s134, %s135
      %p139 = pneg %p133
      %p140 = scmp.eq.s32.totalorder %s14, 1
      %p141 = por %p139, %p140
      %p142 = scmp.ne.s32.totalorder %s134, %s137
      %p143 = scmp.eq.s32.totalorder %s14, 0
      %p144 = por %p142, %p143
      %p145 = scmp.ne.s32.totalorder %s134, %s137
      %p146 = scmp.eq.s32.totalorder %s19, 1
      %p147 = por %p145, %p146
      %p148 = scmp.ne.s32.totalorder %s137, %s138
      %p149 = scmp.eq.s32.totalorder %s19, 0
      %p150 = por %p148, %p149
      %p151 = scmp.ne.s32.totalorder %s137, %s138
      %p152 = scmp.eq.s32.totalorder %s20, 1
      %p153 = por %p151, %p152
      %p155 = scmp.ne.s32.totalorder %s138, %s154
      %p156 = scmp.eq.s32.totalorder %s20, 0
      %p157 = por %p155, %p156
      %p158 = scmp.le.s32.totalorder 1, %s14
      %p159 = scmp.lt.s32.totalorder %s14, 3
      %p160 = pnand %p158, %p159
      %p161 = pneg %p160
      // Predicated region
      $region9: #{residual_feedforward.1} parent=5 // pred_check
        _
      $region10: #{residual_feedforward.1} parent=5 // pred_check_branch
        %163 = sbr.rel (%p160) target = $region12
      $region11: #{residual_feedforward.1} parent=5 // pred_region
        %s164 = ssub.s32 %s14, 1
        // Predicated region
        $region13: #{residual_feedforward.1} parent=11 // pred_check
          %p165 = pneg %p61
        $region14: #{residual_feedforward.1} parent=11 // pred_check_branch
          %167 = sbr.rel (%p165) target = $region16
        $region15: #{residual_feedforward.1} parent=11 // pred_region
          _
        $region16: #{residual_feedforward.1} parent=11 // pred_fallthru
          _
        // Predicated region
        $region17: #{residual_feedforward.1} parent=11 // pred_check
          %p168 = pneg %p82
        $region18: #{residual_feedforward.1} parent=11 // pred_check_branch
          %170 = sbr.rel (%p168) target = $region20
        $region19: #{residual_feedforward.1} parent=11 // pred_region
          _
        $region20: #{residual_feedforward.1} parent=11 // pred_fallthru
          _
        // Predicated region
        $region21: #{residual_feedforward.1} parent=11 // pred_check
          %p171 = pneg %p103
        $region22: #{residual_feedforward.1} parent=11 // pred_check_branch
          %173 = sbr.rel (%p171) target = $region24
        $region23: #{residual_feedforward.1} parent=11 // pred_region
          _
        $region24: #{residual_feedforward.1} parent=11 // pred_fallthru
          _
        // Predicated region
        $region25: #{residual_feedforward.1} parent=11 // pred_check
          %p174 = pneg %p124
        $region26: #{residual_feedforward.1} parent=11 // pred_check_branch
          %176 = sbr.rel (%p174) target = $region28
        $region27: #{residual_feedforward.1} parent=11 // pred_region
          _
        $region28: #{residual_feedforward.1} parent=11 // pred_fallthru
          _
      $region12: #{residual_feedforward.1} parent=5 // pred_fallthru
        _
      %p177 = scmp.lt.s32.totalorder %s14, 2
      // Predicated region
      $region29: #{residual_feedforward.1} parent=5 // pred_check
        %p178 = pneg %p177
      $region30: #{residual_feedforward.1} parent=5 // pred_check_branch
        %180 = sbr.rel (%p178) target = $region32
      $region31: #{residual_feedforward.1} parent=5 // pred_region
        // Predicated region
        $region33: #{residual_feedforward.1} parent=31 // pred_check
          %p181 = pneg %p34
        $region34: #{residual_feedforward.1} parent=31 // pred_check_branch
          %183 = sbr.rel (%p181) target = $region36
        $region35: #{residual_feedforward.1} parent=31 // pred_region
          %s184 = smul.u32 32, %s14
          %s185 = ssub.s32 50, %s184
          %p186 = scmp.lt.s32.totalorder %s185, 32
          %s187 = scalar_select %p186, %s185, 32
          %s188 = smul.u32 128, %s187
          %p189 = scmp.lt.s32.totalorder %s184, 49
          %s190 = scalar_select %p189, %s184, 49
          %s191 = smul.addr %s190, 8
          %s192 = scalar_lea.vmem %s0, %s191
          %s193 = smul.u32 32, %s14
          %s194 = ssub.s32 50, %s193
          %p195 = scmp.lt.s32.totalorder %s194, 32
          %s196 = scalar_select %p195, %s194, 32
          %s197 = smul.u32 128, %s196
        $region36: #{residual_feedforward.1} parent=31 // pred_fallthru
          _
      $region32: #{residual_feedforward.1} parent=5 // pred_fallthru
        _
      %p198 = scmp.le.s32.totalorder 1, %s14
      %p199 = scmp.lt.s32.totalorder %s14, 3
      %p200 = pnand %p198, %p199
      %p201 = pneg %p200
      // Predicated region
      $region37: #{residual_feedforward.1} parent=5 // pred_check
        _
      $region38: #{residual_feedforward.1} parent=5 // pred_check_branch
        %203 = sbr.rel (%p200) target = $region40
      $region39: #{residual_feedforward.1} parent=5 // pred_region
        %s204 = ssub.s32 %s14, 1
        %s205 = smul.u32 32, %s19
        %s206 = ssub.s32 50, %s205
        %p207 = scmp.lt.s32.totalorder %s206, 32
        %s208 = scalar_select %p207, %s206, 32
        %s209 = smul.u32 128, %s208
        %p210 = scmp.lt.s32.totalorder %s205, 49
        %s211 = scalar_select %p210, %s205, 49
        %s212 = smul.addr %s211, 8
        %s213 = scalar_lea.vmem %s0, %s212
        %p214 = pneg %p40
        %p215 = pneg %p37
        %p216 = pneg %p61
        %p217 = pneg %p58
        %p218 = pneg %p82
        %p219 = pneg %p79
        %p220 = pneg %p103
        %p221 = pneg %p100
        %p222 = pneg %p124
        %p223 = pneg %p121
        %p224 = pneg %p150
        %p225 = pneg %p147
        %s226 = sand.u32 %s137, 1
        %s227 = scalar_lea.sflag [#allocation3], %s226
        %s228 = sand.u32 %s137, 1
        %s229 = smul.addr %s228, 256
        %s230 = scalar_lea.vmem [#allocation2], %s229
        %s231 = smul.u32 32, %s19
        %s232 = ssub.s32 50, %s231
        %p233 = scmp.lt.s32.totalorder %s232, 32
        %s234 = scalar_select %p233, %s232, 32
        %s235 = smul.u32 128, %s234
        %p236 = scmp.lt.s32.totalorder %s231, 49
        %s237 = scalar_select %p236, %s231, 49
        %s238 = smul.addr %s237, 8
        %s239 = scalar_lea.vmem %s0, %s238
        %s240 = smul.u32 32, %s19
        %s241 = ssub.s32 50, %s240
        %p242 = scmp.lt.s32.totalorder %s241, 32
        %s243 = scalar_select %p242, %s241, 32
        %s244 = smul.u32 128, %s243
        %s245 = smul.u32 32, %s19
        %s246 = ssub.s32 50, %s245
        %p247 = scmp.lt.s32.totalorder %s246, 32
        %s248 = scalar_select %p247, %s246, 32
        %s249 = smul.u32 128, %s248
        %v251 = vld [vmem:[%s239] sm:$0xff]
        %v252 = vld [vmem:[%s239 + $0x8] sm:$0xff]
        %v253 = vld [vmem:[%s239 + $0x10] sm:$0xff]
        %v254 = vld [vmem:[%s239 + $0x18] sm:$0xff]
        %v255 = vld [vmem:[%s239 + $0x20] sm:$0xff]
        %v256 = vld [vmem:[%s239 + $0x28] sm:$0xff]
        %v257 = vld [vmem:[%s239 + $0x30] sm:$0xff]
        %v258 = vld [vmem:[%s239 + $0x38] sm:$0xff]
        %v259 = vld [vmem:[%s239 + $0x40] sm:$0xff]
        %v260 = vld [vmem:[%s239 + $0x48] sm:$0xff]
        %v261 = vld [vmem:[%s239 + $0x50] sm:$0xff]
        %v262 = vld [vmem:[%s239 + $0x58] sm:$0xff]
        %v263 = vld [vmem:[%s239 + $0x60] sm:$0xff]
        %v264 = vld [vmem:[%s239 + $0x68] sm:$0xff]
        %v265 = vld [vmem:[%s239 + $0x70] sm:$0xff]
        %v266 = vld [vmem:[%s239 + $0x78] sm:$0xff]
        %v267 = vld [vmem:[%s239 + $0x80] sm:$0xff]
        %v268 = vld [vmem:[%s239 + $0x88] sm:$0xff]
        %v269 = vld [vmem:[%s239 + $0x90] sm:$0xff]
        %v270 = vld [vmem:[%s239 + $0x98] sm:$0xff]
        %v271 = vld [vmem:[%s239 + $0xa0] sm:$0xff]
        %v272 = vld [vmem:[%s239 + $0xa8] sm:$0xff]
        %v273 = vld [vmem:[%s239 + $0xb0] sm:$0xff]
        %v274 = vld [vmem:[%s239 + $0xb8] sm:$0xff]
        %v275 = vld [vmem:[%s239 + $0xc0] sm:$0xff]
        %v276 = vld [vmem:[%s239 + $0xc8] sm:$0xff]
        %v277 = vld [vmem:[%s239 + $0xd0] sm:$0xff]
        %v278 = vld [vmem:[%s239 + $0xd8] sm:$0xff]
        %v279 = vld [vmem:[%s239 + $0xe0] sm:$0xff]
        %v280 = vld [vmem:[%s239 + $0xe8] sm:$0xff]
        %v281 = vld [vmem:[%s239 + $0xf0] sm:$0xff]
        %v282 = vld [vmem:[%s239 + $0xf8] sm:$0xff]
        %v283 = vpack.c.bf16 %v252, %v251
        %v284 = vpack.c.bf16 %v254, %v253
        %v285 = vpack.c.bf16 %v256, %v255
        %v286 = vpack.c.bf16 %v258, %v257
        %v287 = vpack.c.bf16 %v260, %v259
        %v288 = vpack.c.bf16 %v262, %v261
        %v289 = vpack.c.bf16 %v264, %v263
        %v290 = vpack.c.bf16 %v266, %v265
        %v291 = vpack.c.bf16 %v268, %v267
        %v292 = vpack.c.bf16 %v270, %v269
        %v293 = vpack.c.bf16 %v272, %v271
        %v294 = vpack.c.bf16 %v274, %v273
        %v295 = vpack.c.bf16 %v276, %v275
        %v296 = vpack.c.bf16 %v278, %v277
        %v297 = vpack.c.bf16 %v280, %v279
        %v298 = vpack.c.bf16 %v282, %v281
        %v299 = vld [vmem:[%s1] sm:$0xff]
        %v300 = vld [vmem:[%s1 + $0x8] sm:$0xff]
        %v301 = vld [vmem:[%s1 + $0x10] sm:$0xff]
        %v302 = vld [vmem:[%s1 + $0x18] sm:$0xff]
        %v303 = vld [vmem:[%s1 + $0x20] sm:$0xff]
        %v304 = vld [vmem:[%s1 + $0x28] sm:$0xff]
        %v305 = vld [vmem:[%s1 + $0x30] sm:$0xff]
        %v306 = vld [vmem:[%s1 + $0x38] sm:$0xff]
        %v307 = vld [vmem:[%s1 + $0x40] sm:$0xff]
        %v308 = vld [vmem:[%s1 + $0x48] sm:$0xff]
        %v309 = vld [vmem:[%s1 + $0x50] sm:$0xff]
        %v310 = vld [vmem:[%s1 + $0x58] sm:$0xff]
        %v311 = vld [vmem:[%s1 + $0x60] sm:$0xff]
        %v312 = vld [vmem:[%s1 + $0x68] sm:$0xff]
        %v313 = vld [vmem:[%s1 + $0x70] sm:$0xff]
        %v314 = vld [vmem:[%s1 + $0x78] sm:$0xff]
        %v315 = vld [vmem:[%s2] sm:$0x3]
        %v317 = vlaneseq
        %v318 = vshrl.u32 %v317, 7
        %v319 = vsub.s32 0, %v318
        %v320 = vrot.slane %v315, %v319
        %v321 = vlaneseq
        %v322 = vshrl.u32 %v321, 7
        %v323 = vsub.s32 1, %v322
        %v324 = vrot.slane %v315, %v323
        %v343 = vunpack.c.l.b16 %v299
        %v344 = vunpack.c.h.b16 %v299
        %v345 = vunpack.c.l.b16 %v300
        %v346 = vunpack.c.h.b16 %v300
        %v347 = vunpack.c.l.b16 %v301
        %v348 = vunpack.c.h.b16 %v301
        %v349 = vunpack.c.l.b16 %v302
        %v350 = vunpack.c.h.b16 %v302
        %v351 = vunpack.c.l.b16 %v303
        %v352 = vunpack.c.h.b16 %v303
        %v353 = vunpack.c.l.b16 %v304
        %v354 = vunpack.c.h.b16 %v304
        %v355 = vunpack.c.l.b16 %v305
        %v356 = vunpack.c.h.b16 %v305
        %v357 = vunpack.c.l.b16 %v306
        %v358 = vunpack.c.h.b16 %v306
        %v359 = vunpack.c.l.b16 %v307
        %v360 = vunpack.c.h.b16 %v307
        %v361 = vunpack.c.l.b16 %v308
        %v362 = vunpack.c.h.b16 %v308
        %v363 = vunpack.c.l.b16 %v309
        %v364 = vunpack.c.h.b16 %v309
        %v365 = vunpack.c.l.b16 %v310
        %v366 = vunpack.c.h.b16 %v310
        %v367 = vunpack.c.l.b16 %v311
        %v368 = vunpack.c.h.b16 %v311
        %v369 = vunpack.c.l.b16 %v312
        %v370 = vunpack.c.h.b16 %v312
        %v371 = vunpack.c.l.b16 %v313
        %v372 = vunpack.c.h.b16 %v313
        %v373 = vunpack.c.l.b16 %v314
        %v374 = vunpack.c.h.b16 %v314
        %v375 = vpack.c.b16 %v345, %v343
        %v376 = vpack.c.b16 %v346, %v344
        %v377 = vpack.c.b16 %v349, %v347
        %v378 = vpack.c.b16 %v350, %v348
        %v379 = vpack.c.b16 %v353, %v351
        %v380 = vpack.c.b16 %v354, %v352
        %v381 = vpack.c.b16 %v357, %v355
        %v382 = vpack.c.b16 %v358, %v356
        %v383 = vpack.c.b16 %v361, %v359
        %v384 = vpack.c.b16 %v362, %v360
        %v385 = vpack.c.b16 %v365, %v363
        %v386 = vpack.c.b16 %v366, %v364
        %v387 = vpack.c.b16 %v369, %v367
        %v388 = vpack.c.b16 %v370, %v368
        %v389 = vpack.c.b16 %v373, %v371
        %v390 = vpack.c.b16 %v374, %v372
        %407 = vmatprep.subr.bf16.mxu0 %v376
        %408 = vmatpush1.bf16.msra.mxu0 %v375
        %409 = vmatprep.subr.bf16.mxu0 %v378
        %410 = vmatpush1.bf16.msra.mxu0 %v377
        %411 = vmatprep.subr.bf16.mxu0 %v380
        %412 = vmatpush1.bf16.msra.mxu0 %v379
        %413 = vmatprep.subr.bf16.mxu0 %v382
        %414 = vmatpush1.bf16.msra.mxu0 %v381
        %415 = vmatprep.subr.bf16.mxu0 %v384
        %416 = vmatpush1.bf16.msra.mxu0 %v383
        %417 = vmatprep.subr.bf16.mxu0 %v386
        %418 = vmatpush1.bf16.msra.mxu0 %v385
        %419 = vmatprep.subr.bf16.mxu0 %v388
        %420 = vmatpush1.bf16.msra.mxu0 %v387
        %421 = vmatprep.subr.bf16.mxu0 %v390
        %422 = vmatpush1.bf16.msra.mxu0 %v389
        %423 = vmatprep.subr.bf16.mxu0 0
        %424 = vmatpush1.bf16.msra.mxu0 0
        %425 = vmatprep.subr.bf16.mxu0 0
        %426 = vmatpush1.bf16.msra.mxu0 0
        %427 = vmatprep.subr.bf16.mxu0 0
        %428 = vmatpush1.bf16.msra.mxu0 0
        %429 = vmatprep.subr.bf16.mxu0 0
        %430 = vmatpush1.bf16.msra.mxu0 0
        %431 = vmatprep.subr.bf16.mxu0 0
        %432 = vmatpush1.bf16.msra.mxu0 0
        %433 = vmatprep.subr.bf16.mxu0 0
        %434 = vmatpush1.bf16.msra.mxu0 0
        %435 = vmatprep.subr.bf16.mxu0 0
        %436 = vmatpush1.bf16.msra.mxu0 0
        %437 = vmatprep.subr.bf16.mxu0 0
        %438 = vmatpush1.bf16.msra.mxu0 0
        %439 = vmatprep.mubr.bf16.mxu0 0
        %440 = vmatmul.mubr.bf16.gmra.mrb[0].mxu0 %v283
        %v441 = vpop.f32.mrb[0].mxu0
        %v442 = vadd.f32 %v320, %v441
        %v443 = vpop.f32.mrb[0].mxu0
        %v444 = vadd.f32 %v324, %v443
        %v445 = vpop.f32.mrb[0].mxu0
        %v446 = vadd.f32 %v320, %v445
        %v447 = vpop.f32.mrb[0].mxu0
        %v448 = vadd.f32 %v324, %v447
        %449 = vmatprep.mubr.bf16.mxu0 0
        %450 = vmatmul.mubr.bf16.gmra.mrb[0].mxu0 %v284
        %v451 = vpop.f32.mrb[0].mxu0
        %v452 = vadd.f32 %v320, %v451
        %v453 = vpop.f32.mrb[0].mxu0
        %v454 = vadd.f32 %v324, %v453
        %v455 = vpop.f32.mrb[0].mxu0
        %v456 = vadd.f32 %v320, %v455
        %v457 = vpop.f32.mrb[0].mxu0
        %v458 = vadd.f32 %v324, %v457
        %459 = vmatprep.mubr.bf16.mxu0 0
        %460 = vmatmul.mubr.bf16.gmra.mrb[0].mxu0 %v285
        %v461 = vpop.f32.mrb[0].mxu0
        %v462 = vadd.f32 %v320, %v461
        %v463 = vpop.f32.mrb[0].mxu0
        %v464 = vadd.f32 %v324, %v463
        %v465 = vpop.f32.mrb[0].mxu0
        %v466 = vadd.f32 %v320, %v465
        %v467 = vpop.f32.mrb[0].mxu0
        %v468 = vadd.f32 %v324, %v467
        %469 = vmatprep.mubr.bf16.mxu0 0
        %470 = vmatmul.mubr.bf16.gmra.mrb[0].mxu0 %v286
        %v471 = vpop.f32.mrb[0].mxu0
        %v472 = vadd.f32 %v320, %v471
        %v473 = vpop.f32.mrb[0].mxu0
        %v474 = vadd.f32 %v324, %v473
        %v475 = vpop.f32.mrb[0].mxu0
        %v476 = vadd.f32 %v320, %v475
        %v477 = vpop.f32.mrb[0].mxu0
        %v478 = vadd.f32 %v324, %v477
        %479 = vmatprep.mubr.bf16.mxu0 0
        %480 = vmatmul.mubr.bf16.gmra.mrb[0].mxu0 %v287
        %v481 = vpop.f32.mrb[0].mxu0
        %v482 = vadd.f32 %v320, %v481
        %v483 = vpop.f32.mrb[0].mxu0
        %v484 = vadd.f32 %v324, %v483
        %v485 = vpop.f32.mrb[0].mxu0
        %v486 = vadd.f32 %v320, %v485
        %v487 = vpop.f32.mrb[0].mxu0
        %v488 = vadd.f32 %v324, %v487
        %489 = vmatprep.mubr.bf16.mxu0 0
        %490 = vmatmul.mubr.bf16.gmra.mrb[0].mxu0 %v288
        %v491 = vpop.f32.mrb[0].mxu0
        %v492 = vadd.f32 %v320, %v491
        %v493 = vpop.f32.mrb[0].mxu0
        %v494 = vadd.f32 %v324, %v493
        %v495 = vpop.f32.mrb[0].mxu0
        %v496 = vadd.f32 %v320, %v495
        %v497 = vpop.f32.mrb[0].mxu0
        %v498 = vadd.f32 %v324, %v497
        %499 = vmatprep.mubr.bf16.mxu0 0
        %500 = vmatmul.mubr.bf16.gmra.mrb[0].mxu0 %v289
        %v501 = vpop.f32.mrb[0].mxu0
        %v502 = vadd.f32 %v320, %v501
        %v503 = vpop.f32.mrb[0].mxu0
        %v504 = vadd.f32 %v324, %v503
        %v505 = vpop.f32.mrb[0].mxu0
        %v506 = vadd.f32 %v320, %v505
        %v507 = vpop.f32.mrb[0].mxu0
        %v508 = vadd.f32 %v324, %v507
        %509 = vmatprep.mubr.bf16.mxu0 0
        %510 = vmatmul.mubr.bf16.gmra.mrb[0].mxu0 %v290
        %v511 = vpop.f32.mrb[0].mxu0
        %v512 = vadd.f32 %v320, %v511
        %v513 = vpop.f32.mrb[0].mxu0
        %v514 = vadd.f32 %v324, %v513
        %v515 = vpop.f32.mrb[0].mxu0
        %v516 = vadd.f32 %v320, %v515
        %v517 = vpop.f32.mrb[0].mxu0
        %v518 = vadd.f32 %v324, %v517
        %519 = vmatprep.mubr.bf16.mxu0 0
        %520 = vmatmul.mubr.bf16.gmra.mrb[0].mxu0 %v291
        %v521 = vpop.f32.mrb[0].mxu0
        %v522 = vadd.f32 %v320, %v521
        %v523 = vpop.f32.mrb[0].mxu0
        %v524 = vadd.f32 %v324, %v523
        %v525 = vpop.f32.mrb[0].mxu0
        %v526 = vadd.f32 %v320, %v525
        %v527 = vpop.f32.mrb[0].mxu0
        %v528 = vadd.f32 %v324, %v527
        %529 = vmatprep.mubr.bf16.mxu0 0
        %530 = vmatmul.mubr.bf16.gmra.mrb[0].mxu0 %v292
        %v531 = vpop.f32.mrb[0].mxu0
        %v532 = vadd.f32 %v320, %v531
        %v533 = vpop.f32.mrb[0].mxu0
        %v534 = vadd.f32 %v324, %v533
        %v535 = vpop.f32.mrb[0].mxu0
        %v536 = vadd.f32 %v320, %v535
        %v537 = vpop.f32.mrb[0].mxu0
        %v538 = vadd.f32 %v324, %v537
        %539 = vmatprep.mubr.bf16.mxu0 0
        %540 = vmatmul.mubr.bf16.gmra.mrb[0].mxu0 %v293
        %v541 = vpop.f32.mrb[0].mxu0
        %v542 = vadd.f32 %v320, %v541
        %v543 = vpop.f32.mrb[0].mxu0
        %v544 = vadd.f32 %v324, %v543
        %v545 = vpop.f32.mrb[0].mxu0
        %v546 = vadd.f32 %v320, %v545
        %v547 = vpop.f32.mrb[0].mxu0
        %v548 = vadd.f32 %v324, %v547
        %549 = vmatprep.mubr.bf16.mxu0 0
        %550 = vmatmul.mubr.bf16.gmra.mrb[0].mxu0 %v294
        %v551 = vpop.f32.mrb[0].mxu0
        %v552 = vadd.f32 %v320, %v551
        %v553 = vpop.f32.mrb[0].mxu0
        %v554 = vadd.f32 %v324, %v553
        %v555 = vpop.f32.mrb[0].mxu0
        %v556 = vadd.f32 %v320, %v555
        %v557 = vpop.f32.mrb[0].mxu0
        %v558 = vadd.f32 %v324, %v557
        %559 = vmatprep.mubr.bf16.mxu0 0
        %560 = vmatmul.mubr.bf16.gmra.mrb[0].mxu0 %v295
        %v561 = vpop.f32.mrb[0].mxu0
        %v562 = vadd.f32 %v320, %v561
        %v563 = vpop.f32.mrb[0].mxu0
        %v564 = vadd.f32 %v324, %v563
        %v565 = vpop.f32.mrb[0].mxu0
        %v566 = vadd.f32 %v320, %v565
        %v567 = vpop.f32.mrb[0].mxu0
        %v568 = vadd.f32 %v324, %v567
        %569 = vmatprep.mubr.bf16.mxu0 0
        %570 = vmatmul.mubr.bf16.gmra.mrb[0].mxu0 %v296
        %v571 = vpop.f32.mrb[0].mxu0
        %v572 = vadd.f32 %v320, %v571
        %v573 = vpop.f32.mrb[0].mxu0
        %v574 = vadd.f32 %v324, %v573
        %v575 = vpop.f32.mrb[0].mxu0
        %v576 = vadd.f32 %v320, %v575
        %v577 = vpop.f32.mrb[0].mxu0
        %v578 = vadd.f32 %v324, %v577
        %579 = vmatprep.mubr.bf16.mxu0 0
        %580 = vmatmul.mubr.bf16.gmra.mrb[0].mxu0 %v297
        %v581 = vpop.f32.mrb[0].mxu0
        %v582 = vadd.f32 %v320, %v581
        %v583 = vpop.f32.mrb[0].mxu0
        %v584 = vadd.f32 %v324, %v583
        %v585 = vpop.f32.mrb[0].mxu0
        %v586 = vadd.f32 %v320, %v585
        %v587 = vpop.f32.mrb[0].mxu0
        %v588 = vadd.f32 %v324, %v587
        %589 = vmatprep.mubr.bf16.mxu0 0
        %590 = vmatmul.mubr.bf16.gmra.mrb[0].mxu0 %v298
        %v591 = vpop.f32.mrb[0].mxu0
        %v592 = vadd.f32 %v320, %v591
        %v593 = vpop.f32.mrb[0].mxu0
        %v594 = vadd.f32 %v324, %v593
        %v595 = vpop.f32.mrb[0].mxu0
        %v596 = vadd.f32 %v320, %v595
        %v597 = vpop.f32.mrb[0].mxu0
        %v598 = vadd.f32 %v324, %v597
        %599 = vdwg.mxu0
        %v600 = vmul.f32 %v442, %v442
        %v601 = vmul.f32 %v444, %v444
        %v602 = vmul.f32 %v446, %v446
        %v603 = vmul.f32 %v448, %v448
        %v604 = vmul.f32 %v452, %v452
        %v605 = vmul.f32 %v454, %v454
        %v606 = vmul.f32 %v456, %v456
        %v607 = vmul.f32 %v458, %v458
        %v608 = vmul.f32 %v462, %v462
        %v609 = vmul.f32 %v464, %v464
        %v610 = vmul.f32 %v466, %v466
        %v611 = vmul.f32 %v468, %v468
        %v612 = vmul.f32 %v472, %v472
        %v613 = vmul.f32 %v474, %v474
        %v614 = vmul.f32 %v476, %v476
        %v615 = vmul.f32 %v478, %v478
        %v616 = vmul.f32 %v482, %v482
        %v617 = vmul.f32 %v484, %v484
        %v618 = vmul.f32 %v486, %v486
        %v619 = vmul.f32 %v488, %v488
        %v620 = vmul.f32 %v492, %v492
        %v621 = vmul.f32 %v494, %v494
        %v622 = vmul.f32 %v496, %v496
        %v623 = vmul.f32 %v498, %v498
        %v624 = vmul.f32 %v502, %v502
        %v625 = vmul.f32 %v504, %v504
        %v626 = vmul.f32 %v506, %v506
        %v627 = vmul.f32 %v508, %v508
        %v628 = vmul.f32 %v512, %v512
        %v629 = vmul.f32 %v514, %v514
        %v630 = vmul.f32 %v516, %v516
        %v631 = vmul.f32 %v518, %v518
        %v632 = vmul.f32 %v522, %v522
        %v633 = vmul.f32 %v524, %v524
        %v634 = vmul.f32 %v526, %v526
        %v635 = vmul.f32 %v528, %v528
        %v636 = vmul.f32 %v532, %v532
        %v637 = vmul.f32 %v534, %v534
        %v638 = vmul.f32 %v536, %v536
        %v639 = vmul.f32 %v538, %v538
        %v640 = vmul.f32 %v542, %v542
        %v641 = vmul.f32 %v544, %v544
        %v642 = vmul.f32 %v546, %v546
        %v643 = vmul.f32 %v548, %v548
        %v644 = vmul.f32 %v552, %v552
        %v645 = vmul.f32 %v554, %v554
        %v646 = vmul.f32 %v556, %v556
        %v647 = vmul.f32 %v558, %v558
        %v648 = vmul.f32 %v562, %v562
        %v649 = vmul.f32 %v564, %v564
        %v650 = vmul.f32 %v566, %v566
        %v651 = vmul.f32 %v568, %v568
        %v652 = vmul.f32 %v572, %v572
        %v653 = vmul.f32 %v574, %v574
        %v654 = vmul.f32 %v576, %v576
        %v655 = vmul.f32 %v578, %v578
        %v656 = vmul.f32 %v582, %v582
        %v657 = vmul.f32 %v584, %v584
        %v658 = vmul.f32 %v586, %v586
        %v659 = vmul.f32 %v588, %v588
        %v660 = vmul.f32 %v592, %v592
        %v661 = vmul.f32 %v594, %v594
        %v662 = vmul.f32 %v596, %v596
        %v663 = vmul.f32 %v598, %v598
        %v664 = vmul.f32 %v442, %v600
        %v665 = vmul.f32 %v444, %v601
        %v666 = vmul.f32 %v446, %v602
        %v667 = vmul.f32 %v448, %v603
        %v668 = vmul.f32 %v452, %v604
        %v669 = vmul.f32 %v454, %v605
        %v670 = vmul.f32 %v456, %v606
        %v671 = vmul.f32 %v458, %v607
        %v672 = vmul.f32 %v462, %v608
        %v673 = vmul.f32 %v464, %v609
        %v674 = vmul.f32 %v466, %v610
        %v675 = vmul.f32 %v468, %v611
        %v676 = vmul.f32 %v472, %v612
        %v677 = vmul.f32 %v474, %v613
        %v678 = vmul.f32 %v476, %v614
        %v679 = vmul.f32 %v478, %v615
        %v680 = vmul.f32 %v482, %v616
        %v681 = vmul.f32 %v484, %v617
        %v682 = vmul.f32 %v486, %v618
        %v683 = vmul.f32 %v488, %v619
        %v684 = vmul.f32 %v492, %v620
        %v685 = vmul.f32 %v494, %v621
        %v686 = vmul.f32 %v496, %v622
        %v687 = vmul.f32 %v498, %v623
        %v688 = vmul.f32 %v502, %v624
        %v689 = vmul.f32 %v504, %v625
        %v690 = vmul.f32 %v506, %v626
        %v691 = vmul.f32 %v508, %v627
        %v692 = vmul.f32 %v512, %v628
        %v693 = vmul.f32 %v514, %v629
        %v694 = vmul.f32 %v516, %v630
        %v695 = vmul.f32 %v518, %v631
        %v696 = vmul.f32 %v522, %v632
        %v697 = vmul.f32 %v524, %v633
        %v698 = vmul.f32 %v526, %v634
        %v699 = vmul.f32 %v528, %v635
        %v700 = vmul.f32 %v532, %v636
        %v701 = vmul.f32 %v534, %v637
        %v702 = vmul.f32 %v536, %v638
        %v703 = vmul.f32 %v538, %v639
        %v704 = vmul.f32 %v542, %v640
        %v705 = vmul.f32 %v544, %v641
        %v706 = vmul.f32 %v546, %v642
        %v707 = vmul.f32 %v548, %v643
        %v708 = vmul.f32 %v552, %v644
        %v709 = vmul.f32 %v554, %v645
        %v710 = vmul.f32 %v556, %v646
        %v711 = vmul.f32 %v558, %v647
        %v712 = vmul.f32 %v562, %v648
        %v713 = vmul.f32 %v564, %v649
        %v714 = vmul.f32 %v566, %v650
        %v715 = vmul.f32 %v568, %v651
        %v716 = vmul.f32 %v572, %v652
        %v717 = vmul.f32 %v574, %v653
        %v718 = vmul.f32 %v576, %v654
        %v719 = vmul.f32 %v578, %v655
        %v720 = vmul.f32 %v582, %v656
        %v721 = vmul.f32 %v584, %v657
        %v722 = vmul.f32 %v586, %v658
        %v723 = vmul.f32 %v588, %v659
        %v724 = vmul.f32 %v592, %v660
        %v725 = vmul.f32 %v594, %v661
        %v726 = vmul.f32 %v596, %v662
        %v727 = vmul.f32 %v598, %v663
        %v728 = vmul.f32 %v664, 0.044715
        %v729 = vmul.f32 %v665, 0.044715
        %v730 = vmul.f32 %v666, 0.044715
        %v731 = vmul.f32 %v667, 0.044715
        %v732 = vmul.f32 %v668, 0.044715
        %v733 = vmul.f32 %v669, 0.044715
        %v734 = vmul.f32 %v670, 0.044715
        %v735 = vmul.f32 %v671, 0.044715
        %v736 = vmul.f32 %v672, 0.044715
        %v737 = vmul.f32 %v673, 0.044715
        %v738 = vmul.f32 %v674, 0.044715
        %v739 = vmul.f32 %v675, 0.044715
        %v740 = vmul.f32 %v676, 0.044715
        %v741 = vmul.f32 %v677, 0.044715
        %v742 = vmul.f32 %v678, 0.044715
        %v743 = vmul.f32 %v679, 0.044715
        %v744 = vmul.f32 %v680, 0.044715
        %v745 = vmul.f32 %v681, 0.044715
        %v746 = vmul.f32 %v682, 0.044715
        %v747 = vmul.f32 %v683, 0.044715
        %v748 = vmul.f32 %v684, 0.044715
        %v749 = vmul.f32 %v685, 0.044715
        %v750 = vmul.f32 %v686, 0.044715
        %v751 = vmul.f32 %v687, 0.044715
        %v752 = vmul.f32 %v688, 0.044715
        %v753 = vmul.f32 %v689, 0.044715
        %v754 = vmul.f32 %v690, 0.044715
        %v755 = vmul.f32 %v691, 0.044715
        %v756 = vmul.f32 %v692, 0.044715
        %v757 = vmul.f32 %v693, 0.044715
        %v758 = vmul.f32 %v694, 0.044715
        %v759 = vmul.f32 %v695, 0.044715
        %v760 = vmul.f32 %v696, 0.044715
        %v761 = vmul.f32 %v697, 0.044715
        %v762 = vmul.f32 %v698, 0.044715
        %v763 = vmul.f32 %v699, 0.044715
        %v764 = vmul.f32 %v700, 0.044715
        %v765 = vmul.f32 %v701, 0.044715
        %v766 = vmul.f32 %v702, 0.044715
        %v767 = vmul.f32 %v703, 0.044715
        %v768 = vmul.f32 %v704, 0.044715
        %v769 = vmul.f32 %v705, 0.044715
        %v770 = vmul.f32 %v706, 0.044715
        %v771 = vmul.f32 %v707, 0.044715
        %v772 = vmul.f32 %v708, 0.044715
        %v773 = vmul.f32 %v709, 0.044715
        %v774 = vmul.f32 %v710, 0.044715
        %v775 = vmul.f32 %v711, 0.044715
        %v776 = vmul.f32 %v712, 0.044715
        %v777 = vmul.f32 %v713, 0.044715
        %v778 = vmul.f32 %v714, 0.044715
        %v779 = vmul.f32 %v715, 0.044715
        %v780 = vmul.f32 %v716, 0.044715
        %v781 = vmul.f32 %v717, 0.044715
        %v782 = vmul.f32 %v718, 0.044715
        %v783 = vmul.f32 %v719, 0.044715
        %v784 = vmul.f32 %v720, 0.044715
        %v785 = vmul.f32 %v721, 0.044715
        %v786 = vmul.f32 %v722, 0.044715
        %v787 = vmul.f32 %v723, 0.044715
        %v788 = vmul.f32 %v724, 0.044715
        %v789 = vmul.f32 %v725, 0.044715
        %v790 = vmul.f32 %v726, 0.044715
        %v791 = vmul.f32 %v727, 0.044715
        %v792 = vadd.f32 %v442, %v728
        %v793 = vadd.f32 %v444, %v729
        %v794 = vadd.f32 %v446, %v730
        %v795 = vadd.f32 %v448, %v731
        %v796 = vadd.f32 %v452, %v732
        %v797 = vadd.f32 %v454, %v733
        %v798 = vadd.f32 %v456, %v734
        %v799 = vadd.f32 %v458, %v735
        %v800 = vadd.f32 %v462, %v736
        %v801 = vadd.f32 %v464, %v737
        %v802 = vadd.f32 %v466, %v738
        %v803 = vadd.f32 %v468, %v739
        %v804 = vadd.f32 %v472, %v740
        %v805 = vadd.f32 %v474, %v741
        %v806 = vadd.f32 %v476, %v742
        %v807 = vadd.f32 %v478, %v743
        %v808 = vadd.f32 %v482, %v744
        %v809 = vadd.f32 %v484, %v745
        %v810 = vadd.f32 %v486, %v746
        %v811 = vadd.f32 %v488, %v747
        %v812 = vadd.f32 %v492, %v748
        %v813 = vadd.f32 %v494, %v749
        %v814 = vadd.f32 %v496, %v750
        %v815 = vadd.f32 %v498, %v751
        %v816 = vadd.f32 %v502, %v752
        %v817 = vadd.f32 %v504, %v753
        %v818 = vadd.f32 %v506, %v754
        %v819 = vadd.f32 %v508, %v755
        %v820 = vadd.f32 %v512, %v756
        %v821 = vadd.f32 %v514, %v757
        %v822 = vadd.f32 %v516, %v758
        %v823 = vadd.f32 %v518, %v759
        %v824 = vadd.f32 %v522, %v760
        %v825 = vadd.f32 %v524, %v761
        %v826 = vadd.f32 %v526, %v762
        %v827 = vadd.f32 %v528, %v763
        %v828 = vadd.f32 %v532, %v764
        %v829 = vadd.f32 %v534, %v765
        %v830 = vadd.f32 %v536, %v766
        %v831 = vadd.f32 %v538, %v767
        %v832 = vadd.f32 %v542, %v768
        %v833 = vadd.f32 %v544, %v769
        %v834 = vadd.f32 %v546, %v770
        %v835 = vadd.f32 %v548, %v771
        %v836 = vadd.f32 %v552, %v772
        %v837 = vadd.f32 %v554, %v773
        %v838 = vadd.f32 %v556, %v774
        %v839 = vadd.f32 %v558, %v775
        %v840 = vadd.f32 %v562, %v776
        %v841 = vadd.f32 %v564, %v777
        %v842 = vadd.f32 %v566, %v778
        %v843 = vadd.f32 %v568, %v779
        %v844 = vadd.f32 %v572, %v780
        %v845 = vadd.f32 %v574, %v781
        %v846 = vadd.f32 %v576, %v782
        %v847 = vadd.f32 %v578, %v783
        %v848 = vadd.f32 %v582, %v784
        %v849 = vadd.f32 %v584, %v785
        %v850 = vadd.f32 %v586, %v786
        %v851 = vadd.f32 %v588, %v787
        %v852 = vadd.f32 %v592, %v788
        %v853 = vadd.f32 %v594, %v789
        %v854 = vadd.f32 %v596, %v790
        %v855 = vadd.f32 %v598, %v791
        %v856 = vmul.f32 %v792, 0.7978846
        %v857 = vmul.f32 %v793, 0.7978846
        %v858 = vmul.f32 %v794, 0.7978846
        %v859 = vmul.f32 %v795, 0.7978846
        %v860 = vmul.f32 %v796, 0.7978846
        %v861 = vmul.f32 %v797, 0.7978846
        %v862 = vmul.f32 %v798, 0.7978846
        %v863 = vmul.f32 %v799, 0.7978846
        %v864 = vmul.f32 %v800, 0.7978846
        %v865 = vmul.f32 %v801, 0.7978846
        %v866 = vmul.f32 %v802, 0.7978846
        %v867 = vmul.f32 %v803, 0.7978846
        %v868 = vmul.f32 %v804, 0.7978846
        %v869 = vmul.f32 %v805, 0.7978846
        %v870 = vmul.f32 %v806, 0.7978846
        %v871 = vmul.f32 %v807, 0.7978846
        %v872 = vmul.f32 %v808, 0.7978846
        %v873 = vmul.f32 %v809, 0.7978846
        %v874 = vmul.f32 %v810, 0.7978846
        %v875 = vmul.f32 %v811, 0.7978846
        %v876 = vmul.f32 %v812, 0.7978846
        %v877 = vmul.f32 %v813, 0.7978846
        %v878 = vmul.f32 %v814, 0.7978846
        %v879 = vmul.f32 %v815, 0.7978846
        %v880 = vmul.f32 %v816, 0.7978846
        %v881 = vmul.f32 %v817, 0.7978846
        %v882 = vmul.f32 %v818, 0.7978846
        %v883 = vmul.f32 %v819, 0.7978846
        %v884 = vmul.f32 %v820, 0.7978846
        %v885 = vmul.f32 %v821, 0.7978846
        %v886 = vmul.f32 %v822, 0.7978846
        %v887 = vmul.f32 %v823, 0.7978846
        %v888 = vmul.f32 %v824, 0.7978846
        %v889 = vmul.f32 %v825, 0.7978846
        %v890 = vmul.f32 %v826, 0.7978846
        %v891 = vmul.f32 %v827, 0.7978846
        %v892 = vmul.f32 %v828, 0.7978846
        %v893 = vmul.f32 %v829, 0.7978846
        %v894 = vmul.f32 %v830, 0.7978846
        %v895 = vmul.f32 %v831, 0.7978846
        %v896 = vmul.f32 %v832, 0.7978846
        %v897 = vmul.f32 %v833, 0.7978846
        %v898 = vmul.f32 %v834, 0.7978846
        %v899 = vmul.f32 %v835, 0.7978846
        %v900 = vmul.f32 %v836, 0.7978846
        %v901 = vmul.f32 %v837, 0.7978846
        %v902 = vmul.f32 %v838, 0.7978846
        %v903 = vmul.f32 %v839, 0.7978846
        %v904 = vmul.f32 %v840, 0.7978846
        %v905 = vmul.f32 %v841, 0.7978846
        %v906 = vmul.f32 %v842, 0.7978846
        %v907 = vmul.f32 %v843, 0.7978846
        %v908 = vmul.f32 %v844, 0.7978846
        %v909 = vmul.f32 %v845, 0.7978846
        %v910 = vmul.f32 %v846, 0.7978846
        %v911 = vmul.f32 %v847, 0.7978846
        %v912 = vmul.f32 %v848, 0.7978846
        %v913 = vmul.f32 %v849, 0.7978846
        %v914 = vmul.f32 %v850, 0.7978846
        %v915 = vmul.f32 %v851, 0.7978846
        %v916 = vmul.f32 %v852, 0.7978846
        %v917 = vmul.f32 %v853, 0.7978846
        %v918 = vmul.f32 %v854, 0.7978846
        %v919 = vmul.f32 %v855, 0.7978846
        %v920 = vtanh.pop %v856
        %v921 = vtanh.pop %v857
        %v922 = vtanh.pop %v858
        %v923 = vtanh.pop %v859
        %v924 = vtanh.pop %v860
        %v925 = vtanh.pop %v861
        %v926 = vtanh.pop %v862
        %v927 = vtanh.pop %v863
        %v928 = vtanh.pop %v864
        %v929 = vtanh.pop %v865
        %v930 = vtanh.pop %v866
        %v931 = vtanh.pop %v867
        %v932 = vtanh.pop %v868
        %v933 = vtanh.pop %v869
        %v934 = vtanh.pop %v870
        %v935 = vtanh.pop %v871
        %v936 = vtanh.pop %v872
        %v937 = vtanh.pop %v873
        %v938 = vtanh.pop %v874
        %v939 = vtanh.pop %v875
        %v940 = vtanh.pop %v876
        %v941 = vtanh.pop %v877
        %v942 = vtanh.pop %v878
        %v943 = vtanh.pop %v879
        %v944 = vtanh.pop %v880
        %v945 = vtanh.pop %v881
        %v946 = vtanh.pop %v882
        %v947 = vtanh.pop %v883
        %v948 = vtanh.pop %v884
        %v949 = vtanh.pop %v885
        %v950 = vtanh.pop %v886
        %v951 = vtanh.pop %v887
        %v952 = vtanh.pop %v888
        %v953 = vtanh.pop %v889
        %v954 = vtanh.pop %v890
        %v955 = vtanh.pop %v891
        %v956 = vtanh.pop %v892
        %v957 = vtanh.pop %v893
        %v958 = vtanh.pop %v894
        %v959 = vtanh.pop %v895
        %v960 = vtanh.pop %v896
        %v961 = vtanh.pop %v897
        %v962 = vtanh.pop %v898
        %v963 = vtanh.pop %v899
        %v964 = vtanh.pop %v900
        %v965 = vtanh.pop %v901
        %v966 = vtanh.pop %v902
        %v967 = vtanh.pop %v903
        %v968 = vtanh.pop %v904
        %v969 = vtanh.pop %v905
        %v970 = vtanh.pop %v906
        %v971 = vtanh.pop %v907
        %v972 = vtanh.pop %v908
        %v973 = vtanh.pop %v909
        %v974 = vtanh.pop %v910
        %v975 = vtanh.pop %v911
        %v976 = vtanh.pop %v912
        %v977 = vtanh.pop %v913
        %v978 = vtanh.pop %v914
        %v979 = vtanh.pop %v915
        %v980 = vtanh.pop %v916
        %v981 = vtanh.pop %v917
        %v982 = vtanh.pop %v918
        %v983 = vtanh.pop %v919
        %v984 = vadd.f32 %v920, 1.0
        %v985 = vadd.f32 %v921, 1.0
        %v986 = vadd.f32 %v922, 1.0
        %v987 = vadd.f32 %v923, 1.0
        %v988 = vadd.f32 %v924, 1.0
        %v989 = vadd.f32 %v925, 1.0
        %v990 = vadd.f32 %v926, 1.0
        %v991 = vadd.f32 %v927, 1.0
        %v992 = vadd.f32 %v928, 1.0
        %v993 = vadd.f32 %v929, 1.0
        %v994 = vadd.f32 %v930, 1.0
        %v995 = vadd.f32 %v931, 1.0
        %v996 = vadd.f32 %v932, 1.0
        %v997 = vadd.f32 %v933, 1.0
        %v998 = vadd.f32 %v934, 1.0
        %v999 = vadd.f32 %v935, 1.0
        %v1000 = vadd.f32 %v936, 1.0
        %v1001 = vadd.f32 %v937, 1.0
        %v1002 = vadd.f32 %v938, 1.0
        %v1003 = vadd.f32 %v939, 1.0
        %v1004 = vadd.f32 %v940, 1.0
        %v1005 = vadd.f32 %v941, 1.0
        %v1006 = vadd.f32 %v942, 1.0
        %v1007 = vadd.f32 %v943, 1.0
        %v1008 = vadd.f32 %v944, 1.0
        %v1009 = vadd.f32 %v945, 1.0
        %v1010 = vadd.f32 %v946, 1.0
        %v1011 = vadd.f32 %v947, 1.0
        %v1012 = vadd.f32 %v948, 1.0
        %v1013 = vadd.f32 %v949, 1.0
        %v1014 = vadd.f32 %v950, 1.0
        %v1015 = vadd.f32 %v951, 1.0
        %v1016 = vadd.f32 %v952, 1.0
        %v1017 = vadd.f32 %v953, 1.0
        %v1018 = vadd.f32 %v954, 1.0
        %v1019 = vadd.f32 %v955, 1.0
        %v1020 = vadd.f32 %v956, 1.0
        %v1021 = vadd.f32 %v957, 1.0
        %v1022 = vadd.f32 %v958, 1.0
        %v1023 = vadd.f32 %v959, 1.0
        %v1024 = vadd.f32 %v960, 1.0
        %v1025 = vadd.f32 %v961, 1.0
        %v1026 = vadd.f32 %v962, 1.0
        %v1027 = vadd.f32 %v963, 1.0
        %v1028 = vadd.f32 %v964, 1.0
        %v1029 = vadd.f32 %v965, 1.0
        %v1030 = vadd.f32 %v966, 1.0
        %v1031 = vadd.f32 %v967, 1.0
        %v1032 = vadd.f32 %v968, 1.0
        %v1033 = vadd.f32 %v969, 1.0
        %v1034 = vadd.f32 %v970, 1.0
        %v1035 = vadd.f32 %v971, 1.0
        %v1036 = vadd.f32 %v972, 1.0
        %v1037 = vadd.f32 %v973, 1.0
        %v1038 = vadd.f32 %v974, 1.0
        %v1039 = vadd.f32 %v975, 1.0
        %v1040 = vadd.f32 %v976, 1.0
        %v1041 = vadd.f32 %v977, 1.0
        %v1042 = vadd.f32 %v978, 1.0
        %v1043 = vadd.f32 %v979, 1.0
        %v1044 = vadd.f32 %v980, 1.0
        %v1045 = vadd.f32 %v981, 1.0
        %v1046 = vadd.f32 %v982, 1.0
        %v1047 = vadd.f32 %v983, 1.0
        %v1048 = vmul.f32 %v984, 0.5
        %v1049 = vmul.f32 %v985, 0.5
        %v1050 = vmul.f32 %v986, 0.5
        %v1051 = vmul.f32 %v987, 0.5
        %v1052 = vmul.f32 %v988, 0.5
        %v1053 = vmul.f32 %v989, 0.5
        %v1054 = vmul.f32 %v990, 0.5
        %v1055 = vmul.f32 %v991, 0.5
        %v1056 = vmul.f32 %v992, 0.5
        %v1057 = vmul.f32 %v993, 0.5
        %v1058 = vmul.f32 %v994, 0.5
        %v1059 = vmul.f32 %v995, 0.5
        %v1060 = vmul.f32 %v996, 0.5
        %v1061 = vmul.f32 %v997, 0.5
        %v1062 = vmul.f32 %v998, 0.5
        %v1063 = vmul.f32 %v999, 0.5
        %v1064 = vmul.f32 %v1000, 0.5
        %v1065 = vmul.f32 %v1001, 0.5
        %v1066 = vmul.f32 %v1002, 0.5
        %v1067 = vmul.f32 %v1003, 0.5
        %v1068 = vmul.f32 %v1004, 0.5
        %v1069 = vmul.f32 %v1005, 0.5
        %v1070 = vmul.f32 %v1006, 0.5
        %v1071 = vmul.f32 %v1007, 0.5
        %v1072 = vmul.f32 %v1008, 0.5
        %v1073 = vmul.f32 %v1009, 0.5
        %v1074 = vmul.f32 %v1010, 0.5
        %v1075 = vmul.f32 %v1011, 0.5
        %v1076 = vmul.f32 %v1012, 0.5
        %v1077 = vmul.f32 %v1013, 0.5
        %v1078 = vmul.f32 %v1014, 0.5
        %v1079 = vmul.f32 %v1015, 0.5
        %v1080 = vmul.f32 %v1016, 0.5
        %v1081 = vmul.f32 %v1017, 0.5
        %v1082 = vmul.f32 %v1018, 0.5
        %v1083 = vmul.f32 %v1019, 0.5
        %v1084 = vmul.f32 %v1020, 0.5
        %v1085 = vmul.f32 %v1021, 0.5
        %v1086 = vmul.f32 %v1022, 0.5
        %v1087 = vmul.f32 %v1023, 0.5
        %v1088 = vmul.f32 %v1024, 0.5
        %v1089 = vmul.f32 %v1025, 0.5
        %v1090 = vmul.f32 %v1026, 0.5
        %v1091 = vmul.f32 %v1027, 0.5
        %v1092 = vmul.f32 %v1028, 0.5
        %v1093 = vmul.f32 %v1029, 0.5
        %v1094 = vmul.f32 %v1030, 0.5
        %v1095 = vmul.f32 %v1031, 0.5
        %v1096 = vmul.f32 %v1032, 0.5
        %v1097 = vmul.f32 %v1033, 0.5
        %v1098 = vmul.f32 %v1034, 0.5
        %v1099 = vmul.f32 %v1035, 0.5
        %v1100 = vmul.f32 %v1036, 0.5
        %v1101 = vmul.f32 %v1037, 0.5
        %v1102 = vmul.f32 %v1038, 0.5
        %v1103 = vmul.f32 %v1039, 0.5
        %v1104 = vmul.f32 %v1040, 0.5
        %v1105 = vmul.f32 %v1041, 0.5
        %v1106 = vmul.f32 %v1042, 0.5
        %v1107 = vmul.f32 %v1043, 0.5
        %v1108 = vmul.f32 %v1044, 0.5
        %v1109 = vmul.f32 %v1045, 0.5
        %v1110 = vmul.f32 %v1046, 0.5
        %v1111 = vmul.f32 %v1047, 0.5
        %v1112 = vmul.f32 %v442, %v1048
        %v1113 = vmul.f32 %v444, %v1049
        %v1114 = vmul.f32 %v446, %v1050
        %v1115 = vmul.f32 %v448, %v1051
        %v1116 = vmul.f32 %v452, %v1052
        %v1117 = vmul.f32 %v454, %v1053
        %v1118 = vmul.f32 %v456, %v1054
        %v1119 = vmul.f32 %v458, %v1055
        %v1120 = vmul.f32 %v462, %v1056
        %v1121 = vmul.f32 %v464, %v1057
        %v1122 = vmul.f32 %v466, %v1058
        %v1123 = vmul.f32 %v468, %v1059
        %v1124 = vmul.f32 %v472, %v1060
        %v1125 = vmul.f32 %v474, %v1061
        %v1126 = vmul.f32 %v476, %v1062
        %v1127 = vmul.f32 %v478, %v1063
        %v1128 = vmul.f32 %v482, %v1064
        %v1129 = vmul.f32 %v484, %v1065
        %v1130 = vmul.f32 %v486, %v1066
        %v1131 = vmul.f32 %v488, %v1067
        %v1132 = vmul.f32 %v492, %v1068
        %v1133 = vmul.f32 %v494, %v1069
        %v1134 = vmul.f32 %v496, %v1070
        %v1135 = vmul.f32 %v498, %v1071
        %v1136 = vmul.f32 %v502, %v1072
        %v1137 = vmul.f32 %v504, %v1073
        %v1138 = vmul.f32 %v506, %v1074
        %v1139 = vmul.f32 %v508, %v1075
        %v1140 = vmul.f32 %v512, %v1076
        %v1141 = vmul.f32 %v514, %v1077
        %v1142 = vmul.f32 %v516, %v1078
        %v1143 = vmul.f32 %v518, %v1079
        %v1144 = vmul.f32 %v522, %v1080
        %v1145 = vmul.f32 %v524, %v1081
        %v1146 = vmul.f32 %v526, %v1082
        %v1147 = vmul.f32 %v528, %v1083
        %v1148 = vmul.f32 %v532, %v1084
        %v1149 = vmul.f32 %v534, %v1085
        %v1150 = vmul.f32 %v536, %v1086
        %v1151 = vmul.f32 %v538, %v1087
        %v1152 = vmul.f32 %v542, %v1088
        %v1153 = vmul.f32 %v544, %v1089
        %v1154 = vmul.f32 %v546, %v1090
        %v1155 = vmul.f32 %v548, %v1091
        %v1156 = vmul.f32 %v552, %v1092
        %v1157 = vmul.f32 %v554, %v1093
        %v1158 = vmul.f32 %v556, %v1094
        %v1159 = vmul.f32 %v558, %v1095
        %v1160 = vmul.f32 %v562, %v1096
        %v1161 = vmul.f32 %v564, %v1097
        %v1162 = vmul.f32 %v566, %v1098
        %v1163 = vmul.f32 %v568, %v1099
        %v1164 = vmul.f32 %v572, %v1100
        %v1165 = vmul.f32 %v574, %v1101
        %v1166 = vmul.f32 %v576, %v1102
        %v1167 = vmul.f32 %v578, %v1103
        %v1168 = vmul.f32 %v582, %v1104
        %v1169 = vmul.f32 %v584, %v1105
        %v1170 = vmul.f32 %v586, %v1106
        %v1171 = vmul.f32 %v588, %v1107
        %v1172 = vmul.f32 %v592, %v1108
        %v1173 = vmul.f32 %v594, %v1109
        %v1174 = vmul.f32 %v596, %v1110
        %v1175 = vmul.f32 %v598, %v1111
        %v1176 = vpack.c.bf16 %v1114, %v1112
        %v1177 = vpack.c.bf16 %v1115, %v1113
        %v1178 = vpack.c.bf16 %v1118, %v1116
        %v1179 = vpack.c.bf16 %v1119, %v1117
        %v1180 = vpack.c.bf16 %v1122, %v1120
        %v1181 = vpack.c.bf16 %v1123, %v1121
        %v1182 = vpack.c.bf16 %v1126, %v1124
        %v1183 = vpack.c.bf16 %v1127, %v1125
        %v1184 = vpack.c.bf16 %v1130, %v1128
        %v1185 = vpack.c.bf16 %v1131, %v1129
        %v1186 = vpack.c.bf16 %v1134, %v1132
        %v1187 = vpack.c.bf16 %v1135, %v1133
        %v1188 = vpack.c.bf16 %v1138, %v1136
        %v1189 = vpack.c.bf16 %v1139, %v1137
        %v1190 = vpack.c.bf16 %v1142, %v1140
        %v1191 = vpack.c.bf16 %v1143, %v1141
        %v1192 = vpack.c.bf16 %v1146, %v1144
        %v1193 = vpack.c.bf16 %v1147, %v1145
        %v1194 = vpack.c.bf16 %v1150, %v1148
        %v1195 = vpack.c.bf16 %v1151, %v1149
        %v1196 = vpack.c.bf16 %v1154, %v1152
        %v1197 = vpack.c.bf16 %v1155, %v1153
        %v1198 = vpack.c.bf16 %v1158, %v1156
        %v1199 = vpack.c.bf16 %v1159, %v1157
        %v1200 = vpack.c.bf16 %v1162, %v1160
        %v1201 = vpack.c.bf16 %v1163, %v1161
        %v1202 = vpack.c.bf16 %v1166, %v1164
        %v1203 = vpack.c.bf16 %v1167, %v1165
        %v1204 = vpack.c.bf16 %v1170, %v1168
        %v1205 = vpack.c.bf16 %v1171, %v1169
        %v1206 = vpack.c.bf16 %v1174, %v1172
        %v1207 = vpack.c.bf16 %v1175, %v1173
        %v1208 = vld [vmem:[%s3] sm:$0xf]
        %v1209 = vld [vmem:[%s3 + $0x4] sm:$0xf]
        %v1210 = vld [vmem:[%s3 + $0x8] sm:$0xf]
        %v1211 = vld [vmem:[%s3 + $0xc] sm:$0xf]
        %v1212 = vld [vmem:[%s3 + $0x10] sm:$0xf]
        %v1213 = vld [vmem:[%s3 + $0x14] sm:$0xf]
        %v1214 = vld [vmem:[%s3 + $0x18] sm:$0xf]
        %v1215 = vld [vmem:[%s3 + $0x1c] sm:$0xf]
        %v1216 = vld [vmem:[%s3 + $0x20] sm:$0xf]
        %v1217 = vld [vmem:[%s3 + $0x24] sm:$0xf]
        %v1218 = vld [vmem:[%s3 + $0x28] sm:$0xf]
        %v1219 = vld [vmem:[%s3 + $0x2c] sm:$0xf]
        %v1220 = vld [vmem:[%s3 + $0x30] sm:$0xf]
        %v1221 = vld [vmem:[%s3 + $0x34] sm:$0xf]
        %v1222 = vld [vmem:[%s3 + $0x38] sm:$0xf]
        %v1223 = vld [vmem:[%s3 + $0x3c] sm:$0xf]
        %v1224 = vld [vmem:[%s3 + $0x40] sm:$0xf]
        %v1225 = vld [vmem:[%s3 + $0x44] sm:$0xf]
        %v1226 = vld [vmem:[%s3 + $0x48] sm:$0xf]
        %v1227 = vld [vmem:[%s3 + $0x4c] sm:$0xf]
        %v1228 = vld [vmem:[%s3 + $0x50] sm:$0xf]
        %v1229 = vld [vmem:[%s3 + $0x54] sm:$0xf]
        %v1230 = vld [vmem:[%s3 + $0x58] sm:$0xf]
        %v1231 = vld [vmem:[%s3 + $0x5c] sm:$0xf]
        %v1232 = vld [vmem:[%s3 + $0x60] sm:$0xf]
        %v1233 = vld [vmem:[%s3 + $0x64] sm:$0xf]
        %v1234 = vld [vmem:[%s3 + $0x68] sm:$0xf]
        %v1235 = vld [vmem:[%s3 + $0x6c] sm:$0xf]
        %v1236 = vld [vmem:[%s3 + $0x70] sm:$0xf]
        %v1237 = vld [vmem:[%s3 + $0x74] sm:$0xf]
        %v1238 = vld [vmem:[%s3 + $0x78] sm:$0xf]
        %v1239 = vld [vmem:[%s3 + $0x7c] sm:$0xf]
        %v1240 = vld [vmem:[%s4] sm:$0x1]
        %v1242 = vlaneseq
        %v1243 = vshrl.u32 %v1242, 7
        %v1244 = vsub.s32 0, %v1243
        %v1245 = vrot.slane %v1240, %v1244
        %v1279 = vunpack.c.l.b16 %v1208
        %v1280 = vunpack.c.l.b16 %v1209
        %v1281 = vunpack.c.l.b16 %v1210
        %v1282 = vunpack.c.l.b16 %v1211
        %v1283 = vunpack.c.l.b16 %v1212
        %v1284 = vunpack.c.l.b16 %v1213
        %v1285 = vunpack.c.l.b16 %v1214
        %v1286 = vunpack.c.l.b16 %v1215
        %v1287 = vunpack.c.l.b16 %v1216
        %v1288 = vunpack.c.l.b16 %v1217
        %v1289 = vunpack.c.l.b16 %v1218
        %v1290 = vunpack.c.l.b16 %v1219
        %v1291 = vunpack.c.l.b16 %v1220
        %v1292 = vunpack.c.l.b16 %v1221
        %v1293 = vunpack.c.l.b16 %v1222
        %v1294 = vunpack.c.l.b16 %v1223
        %v1295 = vunpack.c.l.b16 %v1224
        %v1296 = vunpack.c.l.b16 %v1225
        %v1297 = vunpack.c.l.b16 %v1226
        %v1298 = vunpack.c.l.b16 %v1227
        %v1299 = vunpack.c.l.b16 %v1228
        %v1300 = vunpack.c.l.b16 %v1229
        %v1301 = vunpack.c.l.b16 %v1230
        %v1302 = vunpack.c.l.b16 %v1231
        %v1303 = vunpack.c.l.b16 %v1232
        %v1304 = vunpack.c.l.b16 %v1233
        %v1305 = vunpack.c.l.b16 %v1234
        %v1306 = vunpack.c.l.b16 %v1235
        %v1307 = vunpack.c.l.b16 %v1236
        %v1308 = vunpack.c.l.b16 %v1237
        %v1309 = vunpack.c.l.b16 %v1238
        %v1310 = vunpack.c.l.b16 %v1239
        %v1311 = vpack.c.b16 %v1280, %v1279
        %v1312 = vpack.c.b16 %v1282, %v1281
        %v1313 = vpack.c.b16 %v1284, %v1283
        %v1314 = vpack.c.b16 %v1286, %v1285
        %v1315 = vpack.c.b16 %v1288, %v1287
        %v1316 = vpack.c.b16 %v1290, %v1289
        %v1317 = vpack.c.b16 %v1292, %v1291
        %v1318 = vpack.c.b16 %v1294, %v1293
        %v1319 = vpack.c.b16 %v1296, %v1295
        %v1320 = vpack.c.b16 %v1298, %v1297
        %v1321 = vpack.c.b16 %v1300, %v1299
        %v1322 = vpack.c.b16 %v1302, %v1301
        %v1323 = vpack.c.b16 %v1304, %v1303
        %v1324 = vpack.c.b16 %v1306, %v1305
        %v1325 = vpack.c.b16 %v1308, %v1307
        %v1326 = vpack.c.b16 %v1310, %v1309
        %1343 = vmatprep.subr.bf16.mxu0 0
        %1344 = vmatpush1.bf16.msra.mxu0 %v1311
        %1345 = vmatprep.subr.bf16.mxu0 0
        %1346 = vmatpush1.bf16.msra.mxu0 %v1312
        %1347 = vmatprep.subr.bf16.mxu0 0
        %1348 = vmatpush1.bf16.msra.mxu0 %v1313
        %1349 = vmatprep.subr.bf16.mxu0 0
        %1350 = vmatpush1.bf16.msra.mxu0 %v1314
        %1351 = vmatprep.subr.bf16.mxu0 0
        %1352 = vmatpush1.bf16.msra.mxu0 %v1315
        %1353 = vmatprep.subr.bf16.mxu0 0
        %1354 = vmatpush1.bf16.msra.mxu0 %v1316
        %1355 = vmatprep.subr.bf16.mxu0 0
        %1356 = vmatpush1.bf16.msra.mxu0 %v1317
        %1357 = vmatprep.subr.bf16.mxu0 0
        %1358 = vmatpush1.bf16.msra.mxu0 %v1318
        %1359 = vmatprep.subr.bf16.mxu0 0
        %1360 = vmatpush1.bf16.msra.mxu0 %v1319
        %1361 = vmatprep.subr.bf16.mxu0 0
        %1362 = vmatpush1.bf16.msra.mxu0 %v1320
        %1363 = vmatprep.subr.bf16.mxu0 0
        %1364 = vmatpush1.bf16.msra.mxu0 %v1321
        %1365 = vmatprep.subr.bf16.mxu0 0
        %1366 = vmatpush1.bf16.msra.mxu0 %v1322
        %1367 = vmatprep.subr.bf16.mxu0 0
        %1368 = vmatpush1.bf16.msra.mxu0 %v1323
        %1369 = vmatprep.subr.bf16.mxu0 0
        %1370 = vmatpush1.bf16.msra.mxu0 %v1324
        %1371 = vmatprep.subr.bf16.mxu0 0
        %1372 = vmatpush1.bf16.msra.mxu0 %v1325
        %1373 = vmatprep.subr.bf16.mxu0 0
        %1374 = vmatpush1.bf16.msra.mxu0 %v1326
        %1375 = vmatprep.mubr.bf16.mxu0 %v1177
        %1376 = vmatmul.mubr.bf16.gmra.mrb[0].mxu0 %v1176
        %v1377 = vpop.f32.mrb[0].mxu0
        %v1378 = vadd.f32 %v1245, %v1377
        %v1379 = vpop.f32.mrb[0].mxu0
        %v1380 = vpop.f32.mrb[0].mxu0
        %v1381 = vadd.f32 %v1245, %v1380
        %v1382 = vpop.f32.mrb[0].mxu0
        %1383 = vmatprep.mubr.bf16.mxu0 %v1179
        %1384 = vmatmul.mubr.bf16.gmra.mrb[0].mxu0 %v1178
        %v1385 = vpop.f32.mrb[0].mxu0
        %v1386 = vadd.f32 %v1245, %v1385
        %v1387 = vpop.f32.mrb[0].mxu0
        %v1388 = vpop.f32.mrb[0].mxu0
        %v1389 = vadd.f32 %v1245, %v1388
        %v1390 = vpop.f32.mrb[0].mxu0
        %1391 = vmatprep.mubr.bf16.mxu0 %v1181
        %1392 = vmatmul.mubr.bf16.gmra.mrb[0].mxu0 %v1180
        %v1393 = vpop.f32.mrb[0].mxu0
        %v1394 = vadd.f32 %v1245, %v1393
        %v1395 = vpop.f32.mrb[0].mxu0
        %v1396 = vpop.f32.mrb[0].mxu0
        %v1397 = vadd.f32 %v1245, %v1396
        %v1398 = vpop.f32.mrb[0].mxu0
        %1399 = vmatprep.mubr.bf16.mxu0 %v1183
        %1400 = vmatmul.mubr.bf16.gmra.mrb[0].mxu0 %v1182
        %v1401 = vpop.f32.mrb[0].mxu0
        %v1402 = vadd.f32 %v1245, %v1401
        %v1403 = vpop.f32.mrb[0].mxu0
        %v1404 = vpop.f32.mrb[0].mxu0
        %v1405 = vadd.f32 %v1245, %v1404
        %v1406 = vpop.f32.mrb[0].mxu0
        %1407 = vmatprep.mubr.bf16.mxu0 %v1185
        %1408 = vmatmul.mubr.bf16.gmra.mrb[0].mxu0 %v1184
        %v1409 = vpop.f32.mrb[0].mxu0
        %v1410 = vadd.f32 %v1245, %v1409
        %v1411 = vpop.f32.mrb[0].mxu0
        %v1412 = vpop.f32.mrb[0].mxu0
        %v1413 = vadd.f32 %v1245, %v1412
        %v1414 = vpop.f32.mrb[0].mxu0
        %1415 = vmatprep.mubr.bf16.mxu0 %v1187
        %1416 = vmatmul.mubr.bf16.gmra.mrb[0].mxu0 %v1186
        %v1417 = vpop.f32.mrb[0].mxu0
        %v1418 = vadd.f32 %v1245, %v1417
        %v1419 = vpop.f32.mrb[0].mxu0
        %v1420 = vpop.f32.mrb[0].mxu0
        %v1421 = vadd.f32 %v1245, %v1420
        %v1422 = vpop.f32.mrb[0].mxu0
        %1423 = vmatprep.mubr.bf16.mxu0 %v1189
        %1424 = vmatmul.mubr.bf16.gmra.mrb[0].mxu0 %v1188
        %v1425 = vpop.f32.mrb[0].mxu0
        %v1426 = vadd.f32 %v1245, %v1425
        %v1427 = vpop.f32.mrb[0].mxu0
        %v1428 = vpop.f32.mrb[0].mxu0
        %v1429 = vadd.f32 %v1245, %v1428
        %v1430 = vpop.f32.mrb[0].mxu0
        %1431 = vmatprep.mubr.bf16.mxu0 %v1191
        %1432 = vmatmul.mubr.bf16.gmra.mrb[0].mxu0 %v1190
        %v1433 = vpop.f32.mrb[0].mxu0
        %v1434 = vadd.f32 %v1245, %v1433
        %v1435 = vpop.f32.mrb[0].mxu0
        %v1436 = vpop.f32.mrb[0].mxu0
        %v1437 = vadd.f32 %v1245, %v1436
        %v1438 = vpop.f32.mrb[0].mxu0
        %1439 = vmatprep.mubr.bf16.mxu0 %v1193
        %1440 = vmatmul.mubr.bf16.gmra.mrb[0].mxu0 %v1192
        %v1441 = vpop.f32.mrb[0].mxu0
        %v1442 = vadd.f32 %v1245, %v1441
        %v1443 = vpop.f32.mrb[0].mxu0
        %v1444 = vpop.f32.mrb[0].mxu0
        %v1445 = vadd.f32 %v1245, %v1444
        %v1446 = vpop.f32.mrb[0].mxu0
        %1447 = vmatprep.mubr.bf16.mxu0 %v1195
        %1448 = vmatmul.mubr.bf16.gmra.mrb[0].mxu0 %v1194
        %v1449 = vpop.f32.mrb[0].mxu0
        %v1450 = vadd.f32 %v1245, %v1449
        %v1451 = vpop.f32.mrb[0].mxu0
        %v1452 = vpop.f32.mrb[0].mxu0
        %v1453 = vadd.f32 %v1245, %v1452
        %v1454 = vpop.f32.mrb[0].mxu0
        %1455 = vmatprep.mubr.bf16.mxu0 %v1197
        %1456 = vmatmul.mubr.bf16.gmra.mrb[0].mxu0 %v1196
        %v1457 = vpop.f32.mrb[0].mxu0
        %v1458 = vadd.f32 %v1245, %v1457
        %v1459 = vpop.f32.mrb[0].mxu0
        %v1460 = vpop.f32.mrb[0].mxu0
        %v1461 = vadd.f32 %v1245, %v1460
        %v1462 = vpop.f32.mrb[0].mxu0
        %1463 = vmatprep.mubr.bf16.mxu0 %v1199
        %1464 = vmatmul.mubr.bf16.gmra.mrb[0].mxu0 %v1198
        %v1465 = vpop.f32.mrb[0].mxu0
        %v1466 = vadd.f32 %v1245, %v1465
        %v1467 = vpop.f32.mrb[0].mxu0
        %v1468 = vpop.f32.mrb[0].mxu0
        %v1469 = vadd.f32 %v1245, %v1468
        %v1470 = vpop.f32.mrb[0].mxu0
        %1471 = vmatprep.mubr.bf16.mxu0 %v1201
        %1472 = vmatmul.mubr.bf16.gmra.mrb[0].mxu0 %v1200
        %v1473 = vpop.f32.mrb[0].mxu0
        %v1474 = vadd.f32 %v1245, %v1473
        %v1475 = vpop.f32.mrb[0].mxu0
        %v1476 = vpop.f32.mrb[0].mxu0
        %v1477 = vadd.f32 %v1245, %v1476
        %v1478 = vpop.f32.mrb[0].mxu0
        %1479 = vmatprep.mubr.bf16.mxu0 %v1203
        %1480 = vmatmul.mubr.bf16.gmra.mrb[0].mxu0 %v1202
        %v1481 = vpop.f32.mrb[0].mxu0
        %v1482 = vadd.f32 %v1245, %v1481
        %v1483 = vpop.f32.mrb[0].mxu0
        %v1484 = vpop.f32.mrb[0].mxu0
        %v1485 = vadd.f32 %v1245, %v1484
        %v1486 = vpop.f32.mrb[0].mxu0
        %1487 = vmatprep.mubr.bf16.mxu0 %v1205
        %1488 = vmatmul.mubr.bf16.gmra.mrb[0].mxu0 %v1204
        %v1489 = vpop.f32.mrb[0].mxu0
        %v1490 = vadd.f32 %v1245, %v1489
        %v1491 = vpop.f32.mrb[0].mxu0
        %v1492 = vpop.f32.mrb[0].mxu0
        %v1493 = vadd.f32 %v1245, %v1492
        %v1494 = vpop.f32.mrb[0].mxu0
        %1495 = vmatprep.mubr.bf16.mxu0 %v1207
        %1496 = vmatmul.mubr.bf16.gmra.mrb[0].mxu0 %v1206
        %v1497 = vpop.f32.mrb[0].mxu0
        %v1498 = vadd.f32 %v1245, %v1497
        %v1499 = vpop.f32.mrb[0].mxu0
        %v1500 = vpop.f32.mrb[0].mxu0
        %v1501 = vadd.f32 %v1245, %v1500
        %v1502 = vpop.f32.mrb[0].mxu0
        %1503 = vdwg.mxu0
        %v1504 = vadd.f32 %v1378, %v251
        %v1505 = vadd.f32 %v1381, %v252
        %v1506 = vadd.f32 %v1386, %v253
        %v1507 = vadd.f32 %v1389, %v254
        %v1508 = vadd.f32 %v1394, %v255
        %v1509 = vadd.f32 %v1397, %v256
        %v1510 = vadd.f32 %v1402, %v257
        %v1511 = vadd.f32 %v1405, %v258
        %v1512 = vadd.f32 %v1410, %v259
        %v1513 = vadd.f32 %v1413, %v260
        %v1514 = vadd.f32 %v1418, %v261
        %v1515 = vadd.f32 %v1421, %v262
        %v1516 = vadd.f32 %v1426, %v263
        %v1517 = vadd.f32 %v1429, %v264
        %v1518 = vadd.f32 %v1434, %v265
        %v1519 = vadd.f32 %v1437, %v266
        %v1520 = vadd.f32 %v1442, %v267
        %v1521 = vadd.f32 %v1445, %v268
        %v1522 = vadd.f32 %v1450, %v269
        %v1523 = vadd.f32 %v1453, %v270
        %v1524 = vadd.f32 %v1458, %v271
        %v1525 = vadd.f32 %v1461, %v272
        %v1526 = vadd.f32 %v1466, %v273
        %v1527 = vadd.f32 %v1469, %v274
        %v1528 = vadd.f32 %v1474, %v275
        %v1529 = vadd.f32 %v1477, %v276
        %v1530 = vadd.f32 %v1482, %v277
        %v1531 = vadd.f32 %v1485, %v278
        %v1532 = vadd.f32 %v1490, %v279
        %v1533 = vadd.f32 %v1493, %v280
        %v1534 = vadd.f32 %v1498, %v281
        %v1535 = vadd.f32 %v1501, %v282
        %1536 = vst [vmem:[%s230] sm:$0xff] %v1504
        %1537 = vst [vmem:[%s230 + $0x8] sm:$0xff] %v1505
        %1538 = vst [vmem:[%s230 + $0x10] sm:$0xff] %v1506
        %1539 = vst [vmem:[%s230 + $0x18] sm:$0xff] %v1507
        %1540 = vst [vmem:[%s230 + $0x20] sm:$0xff] %v1508
        %1541 = vst [vmem:[%s230 + $0x28] sm:$0xff] %v1509
        %1542 = vst [vmem:[%s230 + $0x30] sm:$0xff] %v1510
        %1543 = vst [vmem:[%s230 + $0x38] sm:$0xff] %v1511
        %1544 = vst [vmem:[%s230 + $0x40] sm:$0xff] %v1512
        %1545 = vst [vmem:[%s230 + $0x48] sm:$0xff] %v1513
        %1546 = vst [vmem:[%s230 + $0x50] sm:$0xff] %v1514
        %1547 = vst [vmem:[%s230 + $0x58] sm:$0xff] %v1515
        %1548 = vst [vmem:[%s230 + $0x60] sm:$0xff] %v1516
        %1549 = vst [vmem:[%s230 + $0x68] sm:$0xff] %v1517
        %1550 = vst [vmem:[%s230 + $0x70] sm:$0xff] %v1518
        %1551 = vst [vmem:[%s230 + $0x78] sm:$0xff] %v1519
        %1552 = vst [vmem:[%s230 + $0x80] sm:$0xff] %v1520
        %1553 = vst [vmem:[%s230 + $0x88] sm:$0xff] %v1521
        %1554 = vst [vmem:[%s230 + $0x90] sm:$0xff] %v1522
        %1555 = vst [vmem:[%s230 + $0x98] sm:$0xff] %v1523
        %1556 = vst [vmem:[%s230 + $0xa0] sm:$0xff] %v1524
        %1557 = vst [vmem:[%s230 + $0xa8] sm:$0xff] %v1525
        %1558 = vst [vmem:[%s230 + $0xb0] sm:$0xff] %v1526
        %1559 = vst [vmem:[%s230 + $0xb8] sm:$0xff] %v1527
        %1560 = vst [vmem:[%s230 + $0xc0] sm:$0xff] %v1528
        %1561 = vst [vmem:[%s230 + $0xc8] sm:$0xff] %v1529
        %1562 = vst [vmem:[%s230 + $0xd0] sm:$0xff] %v1530
        %1563 = vst [vmem:[%s230 + $0xd8] sm:$0xff] %v1531
        %1564 = vst [vmem:[%s230 + $0xe0] sm:$0xff] %v1532
        %1565 = vst [vmem:[%s230 + $0xe8] sm:$0xff] %v1533
        %1566 = vst [vmem:[%s230 + $0xf0] sm:$0xff] %v1534
        %1567 = vst [vmem:[%s230 + $0xf8] sm:$0xff] %v1535
        %s1568 = sand.u32 %s137, 1
        %s1569 = scalar_lea.sflag [#allocation3], %s1568
        %s1570 = sand.u32 %s137, 1
        %s1571 = smul.addr %s1570, 256
        %s1572 = scalar_lea.vmem [#allocation2], %s1571
        // Predicated region
        $region41: #{residual_feedforward.1} parent=39 // pred_check
          %p1573 = pneg %p147
        $region42: #{residual_feedforward.1} parent=39 // pred_check_branch
          %1575 = sbr.rel (%p1573) target = $region44
        $region43: #{residual_feedforward.1} parent=39 // pred_region
          %s1576 = smul.u32 32, %s19
          %s1577 = ssub.s32 50, %s1576
          %p1578 = scmp.lt.s32.totalorder %s1577, 32
          %s1579 = scalar_select %p1578, %s1577, 32
          %s1580 = smul.u32 128, %s1579
          %s1582 = ssub.s32 4096, %s1580
          %1583 = vsyncadd %s1569, %s1582
          %p1584 = scmp.ne.s32.totalorder 0, %s1580
          %s1585 = smul.addr %s1576, 128
          %s1586 = scalar_lea.hbm %s5, %s1585
          %s1587 = smul.u32 8, %s1579
          %s1588 = sshll.u32 %s1572, 4
          %s1589 = int_to_ptr.vmem [resolvable:$true] %s1588
          %s1590 = sshll.u32 %s1587, 4
          %1594 = dma.vmem_to_hbm [thread:$0]  (%p1584), %s1589, %s1590, %s1586, %s1569, 128, 128, 8
        $region44: #{residual_feedforward.1} parent=39 // pred_fallthru
          _
      $region40: #{residual_feedforward.1} parent=5 // pred_fallthru
        _
      %p1595 = scmp.le.s32.totalorder 2, %s14
      // Predicated region
      $region45: #{residual_feedforward.1} parent=5 // pred_check
        %p1596 = pneg %p1595
      $region46: #{residual_feedforward.1} parent=5 // pred_check_branch
        %1598 = sbr.rel (%p1596) target = $region48
      $region47: #{residual_feedforward.1} parent=5 // pred_region
        %s1599 = ssub.s32 %s14, 2
        // Predicated region
        $region49: #{residual_feedforward.1} parent=47 // pred_check
          %p1600 = pneg %p153
        $region50: #{residual_feedforward.1} parent=47 // pred_check_branch
          %1602 = sbr.rel (%p1600) target = $region52
        $region51: #{residual_feedforward.1} parent=47 // pred_region
          %s1603 = sand.u32 %s138, 1
          %s1604 = scalar_lea.sflag [#allocation3], %s1603
          %s1605 = sand.u32 %s138, 1
          %s1606 = smul.addr %s1605, 256
          %s1607 = scalar_lea.vmem [#allocation2], %s1606
          %1608 = dma.done %s1604, 4096
        $region52: #{residual_feedforward.1} parent=47 // pred_fallthru
          _
      $region48: #{residual_feedforward.1} parent=5 // pred_fallthru
        _
    $region6: #{residual_feedforward.1} parent=1 // loop_footer
      %s18 = sadd.s32 1, %s14
    $region7: #{residual_feedforward.1} parent=1 // loop_footer_branch
      %13 = sbr.rel target = $region3
    $region8: #{residual_feedforward.1} parent=1 // loop_exit
      _
    %1609 = vsyncpa [#allocation3], 1
    %s1610 = scalar_lea.sflag [#allocation3], 1
    %1611 = vsyncpa %s1610, 1

</llo_original>
